<compile_context>
chip_gen: v5e
topology: v5e:2x2
jax: 0.10.0
libtpu: 0.0.40
codegen_flags: <defaults>
</compile_context>

<pallas_src>
import functools

import jax
import jax.numpy as jnp
from jax.experimental import pallas as pl
from jax.experimental.pallas import tpu as pltpu

INPUT_CH = 3
INPUT_CH_VIEWS = 3
HIDDEN_DIM = 64
GEO_FEAT_DIM = 15
HIDDEN_DIM_COLOR = 64
IN_DIM = INPUT_CH + INPUT_CH_VIEWS   # 6  = [points(3), views(3)]
OUT_DIM = 4                          # 4  = [color(3), sigma(1)]
WIDE = 2 * HIDDEN_DIM                # 128-lane working width

assert HIDDEN_DIM == HIDDEN_DIM_COLOR  # packing below assumes both are 64


def _round_up(x, m):
    return (x + m - 1) // m * m


def _nerf_kernel(x_ref, wa_ref, wn64_ref, wn128_ref, wc0g_ref, wout_ref, out_ref):
    f32 = jnp.float32
    cdt = wa_ref.dtype                    # matmul-input dtype (bf16 default, f32 exact)
    # Pin f32 dots to HIGHEST so they never lower to bf16-pass emulation.
    prec = jax.lax.Precision.HIGHEST if cdt == f32 else None

    def mm(a, b):                         # MXU matmul, always f32 accumulation
        return jnp.dot(a, b, preferred_element_type=f32, precision=prec)

    relu = lambda v: jnp.maximum(v, 0.0)

    x = x_ref[...].astype(cdt)            # (TM, 6) = [pts | views], cast once

    # Fused layer 0 (shared-LHS N-fusion):
    #   lanes 0:63   = views @ c0_views  (color-L0 partial, pre-activation)
    #   lanes 64:127 = pts   @ w0        (sigma-net h0, pre-activation)
    a = mm(x, wa_ref[...])                          # (TM, 128) f32
    h0 = relu(a).astype(cdt)                        # low-lane garbage -> killed by w1w zero rows

    # ---- sigma net ----
    h1 = relu(mm(h0, wn64_ref[0])).astype(cdt)      # (TM, 64)
    h2 = mm(h1, wn128_ref[0])                       # (TM, 128) f32: sigma@64, geo@65:79, rest 0

    # ---- color net ----
    g = mm(h2.astype(cdt), wc0g_ref[...])           # (TM, 128) f32: geo@c0_geo in lanes 0:63
    hc0 = relu(g + a).astype(cdt)                   # high-lane garbage -> killed by c1w zero rows
    hc1 = relu(mm(hc0, wn64_ref[1])).astype(cdt)    # (TM, 64)
    hc2 = mm(hc1, wn128_ref[1])                     # (TM, 128) f32: color feats in lanes 0:63

    # ---- fused output: color in lanes 0:2, sigma in lane 3; single store ----
    o_in = (relu(hc2) + h2).astype(cdt)             # (TM, 128)
    out_ref[...] = mm(o_in, wout_ref[...]).astype(out_ref.dtype)


@functools.partial(jax.jit, static_argnames=("tm",))
def hash_nerf_forward(x, packed_params, tm=2048):
    """x: (N, 6) = [points(3), views(3)].  Returns (N, 4) = [color(3), sigma(1)].

    tm: requested row tile (rounded to a multiple of 256, default 2048).  The
    effective tile is clamped so there are >= 2 grid steps whenever N > 256, so
    the "parallel" grid axis shards across both v7x TensorCores.
    """
    n, in_dim = x.shape
    assert in_dim == IN_DIM
    w_a, w_n64, w_n128, w_c0g, w_out = packed_params

    tm = max(256, (tm // 256) * 256)                  # (8,128)-rule / bf16-sublane safe
    tm_eff = min(tm, _round_up(-(-n // 2), 256))      # aim for >= 2 grid steps
    n_pad = _round_up(n, tm_eff)
    if n_pad != n:
        x = jnp.pad(x, ((0, n_pad - n), (0, 0)))

    full = lambda arr: pl.BlockSpec(arr.shape, lambda i: (0,) * arr.ndim)

    flops = 2 * n_pad * (IN_DIM * WIDE + WIDE * HIDDEN_DIM + HIDDEN_DIM * WIDE
                         + WIDE * WIDE + WIDE * HIDDEN_DIM_COLOR
                         + HIDDEN_DIM_COLOR * WIDE + WIDE * OUT_DIM)
    bytes_accessed = (n_pad * (IN_DIM + OUT_DIM) * x.dtype.itemsize
                      + sum(int(w.size) * w.dtype.itemsize for w in packed_params))

    out = pl.pallas_call(
        _nerf_kernel,
        out_shape=jax.ShapeDtypeStruct((n_pad, OUT_DIM), x.dtype),
        grid_spec=pltpu.PrefetchScalarGridSpec(
            num_scalar_prefetch=0,
            grid=(n_pad // tm_eff,),
            in_specs=[
                pl.BlockSpec((tm_eff, IN_DIM), lambda i: (i, 0)),
                full(w_a), full(w_n64), full(w_n128), full(w_c0g), full(w_out),
            ],
            out_specs=pl.BlockSpec((tm_eff, OUT_DIM), lambda i: (i, 0)),
        ),
        compiler_params=pltpu.CompilerParams(
            dimension_semantics=("parallel",),
            vmem_limit_bytes=48 * 1024 * 1024,        # safe on v7x's 64 MiB VMEM
        ),
        cost_estimate=pl.CostEstimate(
            flops=flops, transcendentals=0, bytes_accessed=bytes_accessed),
    )(x, w_a, w_n64, w_n128, w_c0g, w_out)
    return out[:n]


def init_params(key):
    """Deterministic init matching torch.nn.Linear(in, out, bias=False):
    weights stored as (in, out); uniform(-1/sqrt(in), 1/sqrt(in))."""
    def linear(k, in_dim, out_dim):
        bound = 1.0 / jnp.sqrt(jnp.float32(in_dim))
        return jax.random.uniform(k, (in_dim, out_dim), jnp.float32,
                                  minval=-bound, maxval=bound)

    keys = jax.random.split(key, 7)
    # sigma net: 3 -> 64 -> 64 -> (1 + 15)
    w0 = linear(keys[0], INPUT_CH, HIDDEN_DIM)
    w1 = linear(keys[1], HIDDEN_DIM, HIDDEN_DIM)
    w2 = linear(keys[2], HIDDEN_DIM, 1 + GEO_FEAT_DIM)
    # color net: (3 + 15) -> 64 -> 64 -> 64 -> 3
    c0 = linear(keys[3], INPUT_CH_VIEWS + GEO_FEAT_DIM, HIDDEN_DIM_COLOR)
    c1 = linear(keys[4], HIDDEN_DIM_COLOR, HIDDEN_DIM_COLOR)
    c2 = linear(keys[5], HIDDEN_DIM_COLOR, HIDDEN_DIM_COLOR)
    c3 = linear(keys[6], HIDDEN_DIM_COLOR, 3)
    return (w0, w1, w2, c0, c1, c2, c3)


def pack_params(raw, dtype=jnp.bfloat16):
    """Pack the 7 PyTorch-layout weights into 5 zero-padded kernel slabs.

    128-lane intermediate layout:
      a   : [ views@c0_views (0:64) | pts@w0 (64:128) ]
      h2  : [ zeros (0:64) | sigma (64) | geo (65:80) | zeros (80:128) ]
      hc* : [ color features (0:64) | ignored (64:128) ]
    All padding is exact zeros, so the math is unchanged (f32 path exact).
    bf16 is the production default (f32 accumulation in-kernel); pass
    dtype=jnp.float32 for bit-exact f32 (e.g. large-scale scene coordinates).
    """
    w0, w1, w2, c0, c1, c2, c3 = raw
    H, HC, W = HIDDEN_DIM, HIDDEN_DIM_COLOR, WIDE
    z = lambda *s: jnp.zeros(s, jnp.float32)
    c0_views, c0_geo = c0[:INPUT_CH_VIEWS], c0[INPUT_CH_VIEWS:]

    # Fused layer-0 weight (6,128): sigma-L0 and the views part of color-L0.
    w_a = (z(IN_DIM, W)
           .at[INPUT_CH:, :HC].set(c0_views)      # views -> color-L0 partial (lanes 0:63)
           .at[:INPUT_CH, H:].set(w0))            # pts   -> sigma h0        (lanes 64:127)

    # (128,64) weights: zero rows discard the unused half of the 128-wide LHS.
    w1w = z(W, H).at[H:, :].set(w1)               # sigma layer 1 (reads lanes 64:127)
    c1w = z(W, HC).at[:HC, :].set(c1)             # color layer 1 (reads lanes 0:63)
    w_n64 = jnp.stack([w1w, c1w])                 # (2, 128, 64)

    # (64,128) widened weights: place results into the fused lane layout.
    w2w = z(H, W).at[:, H:H + 1 + GEO_FEAT_DIM].set(w2)   # sigma -> lane 64, geo -> 65:79
    c2w = z(HC, W).at[:, :HC].set(c2)                     # color feats -> lanes 0:63
    w_n128 = jnp.stack([w2w, c2w])                # (2, 64, 128)

    # color-L0 geo part (128,128): rows 65:80 read geo lanes of h2; write lanes 0:63.
    w_c0g = z(W, W).at[H + 1:H + 1 + GEO_FEAT_DIM, :HC].set(c0_geo)

    # Fused output (128,4): color from lanes 0:63, sigma routed from lane 64 to col 3.
    w_out = z(W, OUT_DIM).at[:HC, :3].set(c3).at[H, 3].set(1.0)

    cast = lambda w: w.astype(dtype)
    return (cast(w_a), cast(w_n64), cast(w_n128), cast(w_c0g), cast(w_out))


def reference_forward(x, raw):
    """Plain-JAX reference reproducing the PyTorch forward (exact f32 dots)."""
    w0, w1, w2, c0, c1, c2, c3 = raw
    dot = lambda a, b: jnp.dot(a, b, precision=jax.lax.Precision.HIGHEST)
    pts, views = x[:, :INPUT_CH], x[:, INPUT_CH:]
    h = jnp.maximum(dot(pts, w0), 0.0)
    h = jnp.maximum(dot(h, w1), 0.0)
    h = dot(h, w2)
    sigma, geo = h[:, 0], h[:, 1:]
    hc = jnp.concatenate([views, geo], axis=-1)
    hc = jnp.maximum(dot(hc, c0), 0.0)
    hc = jnp.maximum(dot(hc, c1), 0.0)
    hc = jnp.maximum(dot(hc, c2), 0.0)
    color = dot(hc, c3)
    return jnp.concatenate([color, sigma[:, None]], axis=-1)


if __name__ == "__main__":
    key = jax.random.PRNGKey(0)
    k_params, k_x = jax.random.split(key)

    raw = init_params(k_params)

    N = 1000  # not a power-of-two multiple: exercises padding + 2 grid steps
    x = jax.random.normal(k_x, (N, IN_DIM), jnp.float32)

    ref = reference_forward(x, raw)

    # Production default: bf16 matmul inputs, f32 accumulation.
    out_bf16 = jax.block_until_ready(hash_nerf_forward(x, pack_params(raw)))
    assert out_bf16.shape == (N, OUT_DIM)
    assert jnp.allclose(out_bf16, ref, atol=7e-2, rtol=7e-2), "bf16 mismatch vs reference"

    # Exact f32 path (zero-padded reformulation, HIGHEST-precision dots).
    out_f32 = jax.block_until_ready(
        hash_nerf_forward(x, pack_params(raw, jnp.float32)))
    assert jnp.allclose(out_f32, ref, atol=1e-4, rtol=1e-4), "f32 mismatch vs reference"

    print("KERNEL_OK")
</pallas_src>

<mosaic_0001>
module attributes {stable_mosaic.version = 11 : i64} {
  func.func @_nerf_kernel(%arg0: i32, %arg1: memref<512x6xf32, #tpu.memory_space<vmem>>, %arg2: memref<6x128xbf16, #tpu.memory_space<vmem>>, %arg3: memref<2x128x64xbf16, #tpu.memory_space<vmem>>, %arg4: memref<2x64x128xbf16, #tpu.memory_space<vmem>>, %arg5: memref<128x128xbf16, #tpu.memory_space<vmem>>, %arg6: memref<128x4xbf16, #tpu.memory_space<vmem>>, %arg7: memref<512x4xf32, #tpu.memory_space<vmem>>) attributes {dimension_semantics = [#tpu.dimension_semantics<parallel>], iteration_bounds = array<i64: 2>, scalar_prefetch = 0 : i64, scratch_operands = 0 : i64, tpu.core_type = #tpu.core_type<tc>, window_params = [{transform_indices = @transform_0, window_bounds = array<i64: 512, 6>}, {pipeline_mode = #tpu.pipeline_mode<synchronous>, transform_indices = @transform_1, window_bounds = array<i64: 6, 128>}, {pipeline_mode = #tpu.pipeline_mode<synchronous>, transform_indices = @transform_2, window_bounds = array<i64: 2, 128, 64>}, {pipeline_mode = #tpu.pipeline_mode<synchronous>, transform_indices = @transform_3, window_bounds = array<i64: 2, 64, 128>}, {pipeline_mode = #tpu.pipeline_mode<synchronous>, transform_indices = @transform_4, window_bounds = array<i64: 128, 128>}, {pipeline_mode = #tpu.pipeline_mode<synchronous>, transform_indices = @transform_5, window_bounds = array<i64: 128, 4>}, {transform_indices = @transform_6, window_bounds = array<i64: 512, 4>}]} {
    %c0 = arith.constant 0 : index
    %c0_0 = arith.constant 0 : index
    %0 = vector.load %arg1[%c0, %c0_0] : memref<512x6xf32, #tpu.memory_space<vmem>>, vector<512x6xf32>
    %1 = arith.truncf %0 : vector<512x6xf32> to vector<512x6xbf16>
    %c0_1 = arith.constant 0 : index
    %c0_2 = arith.constant 0 : index
    %2 = vector.load %arg2[%c0_1, %c0_2] : memref<6x128xbf16, #tpu.memory_space<vmem>>, vector<6x128xbf16>
    %cst = arith.constant dense<0.000000e+00> : vector<512x128xf32>
    %3 = tpu.matmul %1, %2, %cst {dimension_numbers = #tpu.dot_dimension_numbers<[1], [0], [0], [1], [0, 0, 1, 1], [], []>} : vector<512x6xbf16>, vector<6x128xbf16>, vector<512x128xf32> -> vector<512x128xf32>
    %cst_3 = arith.constant 0.000000e+00 : f32
    %4 = vector.broadcast %cst_3 : f32 to vector<512x128xf32>
    %5 = arith.maximumf %3, %4 : vector<512x128xf32>
    %6 = arith.truncf %5 : vector<512x128xf32> to vector<512x128xbf16>
    %c0_4 = arith.constant 0 : index
    %c0_5 = arith.constant 0 : index
    %c0_6 = arith.constant 0 : index
    %7 = vector.load %arg3[%c0_4, %c0_5, %c0_6] : memref<2x128x64xbf16, #tpu.memory_space<vmem>>, vector<1x128x64xbf16>
    %8 = vector.shape_cast %7 : vector<1x128x64xbf16> to vector<128x64xbf16>
    %cst_7 = arith.constant dense<0.000000e+00> : vector<512x64xf32>
    %9 = tpu.matmul %6, %8, %cst_7 {dimension_numbers = #tpu.dot_dimension_numbers<[1], [0], [0], [1], [0, 0, 1, 1], [], []>} : vector<512x128xbf16>, vector<128x64xbf16>, vector<512x64xf32> -> vector<512x64xf32>
    %cst_8 = arith.constant 0.000000e+00 : f32
    %10 = vector.broadcast %cst_8 : f32 to vector<512x64xf32>
    %11 = arith.maximumf %9, %10 : vector<512x64xf32>
    %12 = arith.truncf %11 : vector<512x64xf32> to vector<512x64xbf16>
    %c0_9 = arith.constant 0 : index
    %c0_10 = arith.constant 0 : index
    %c0_11 = arith.constant 0 : index
    %13 = vector.load %arg4[%c0_9, %c0_10, %c0_11] : memref<2x64x128xbf16, #tpu.memory_space<vmem>>, vector<1x64x128xbf16>
    %14 = vector.shape_cast %13 : vector<1x64x128xbf16> to vector<64x128xbf16>
    %cst_12 = arith.constant dense<0.000000e+00> : vector<512x128xf32>
    %15 = tpu.matmul %12, %14, %cst_12 {dimension_numbers = #tpu.dot_dimension_numbers<[1], [0], [0], [1], [0, 0, 1, 1], [], []>} : vector<512x64xbf16>, vector<64x128xbf16>, vector<512x128xf32> -> vector<512x128xf32>
    %16 = arith.truncf %15 : vector<512x128xf32> to vector<512x128xbf16>
    %c0_13 = arith.constant 0 : index
    %c0_14 = arith.constant 0 : index
    %17 = vector.load %arg5[%c0_13, %c0_14] : memref<128x128xbf16, #tpu.memory_space<vmem>>, vector<128x128xbf16>
    %cst_15 = arith.constant dense<0.000000e+00> : vector<512x128xf32>
    %18 = tpu.matmul %16, %17, %cst_15 {dimension_numbers = #tpu.dot_dimension_numbers<[1], [0], [0], [1], [0, 0, 1, 1], [], []>} : vector<512x128xbf16>, vector<128x128xbf16>, vector<512x128xf32> -> vector<512x128xf32>
    %19 = arith.addf %18, %3 : vector<512x128xf32>
    %cst_16 = arith.constant 0.000000e+00 : f32
    %20 = vector.broadcast %cst_16 : f32 to vector<512x128xf32>
    %21 = arith.maximumf %19, %20 : vector<512x128xf32>
    %22 = arith.truncf %21 : vector<512x128xf32> to vector<512x128xbf16>
    %c1 = arith.constant 1 : index
    %c0_17 = arith.constant 0 : index
    %c0_18 = arith.constant 0 : index
    %23 = vector.load %arg3[%c1, %c0_17, %c0_18] : memref<2x128x64xbf16, #tpu.memory_space<vmem>>, vector<1x128x64xbf16>
    %24 = vector.shape_cast %23 : vector<1x128x64xbf16> to vector<128x64xbf16>
    %cst_19 = arith.constant dense<0.000000e+00> : vector<512x64xf32>
    %25 = tpu.matmul %22, %24, %cst_19 {dimension_numbers = #tpu.dot_dimension_numbers<[1], [0], [0], [1], [0, 0, 1, 1], [], []>} : vector<512x128xbf16>, vector<128x64xbf16>, vector<512x64xf32> -> vector<512x64xf32>
    %cst_20 = arith.constant 0.000000e+00 : f32
    %26 = vector.broadcast %cst_20 : f32 to vector<512x64xf32>
    %27 = arith.maximumf %25, %26 : vector<512x64xf32>
    %28 = arith.truncf %27 : vector<512x64xf32> to vector<512x64xbf16>
    %c1_21 = arith.constant 1 : index
    %c0_22 = arith.constant 0 : index
    %c0_23 = arith.constant 0 : index
    %29 = vector.load %arg4[%c1_21, %c0_22, %c0_23] : memref<2x64x128xbf16, #tpu.memory_space<vmem>>, vector<1x64x128xbf16>
    %30 = vector.shape_cast %29 : vector<1x64x128xbf16> to vector<64x128xbf16>
    %cst_24 = arith.constant dense<0.000000e+00> : vector<512x128xf32>
    %31 = tpu.matmul %28, %30, %cst_24 {dimension_numbers = #tpu.dot_dimension_numbers<[1], [0], [0], [1], [0, 0, 1, 1], [], []>} : vector<512x64xbf16>, vector<64x128xbf16>, vector<512x128xf32> -> vector<512x128xf32>
    %cst_25 = arith.constant 0.000000e+00 : f32
    %32 = vector.broadcast %cst_25 : f32 to vector<512x128xf32>
    %33 = arith.maximumf %31, %32 : vector<512x128xf32>
    %34 = arith.addf %33, %15 : vector<512x128xf32>
    %35 = arith.truncf %34 : vector<512x128xf32> to vector<512x128xbf16>
    %c0_26 = arith.constant 0 : index
    %c0_27 = arith.constant 0 : index
    %36 = vector.load %arg6[%c0_26, %c0_27] : memref<128x4xbf16, #tpu.memory_space<vmem>>, vector<128x4xbf16>
    %cst_28 = arith.constant dense<0.000000e+00> : vector<512x4xf32>
    %37 = tpu.matmul %35, %36, %cst_28 {dimension_numbers = #tpu.dot_dimension_numbers<[1], [0], [0], [1], [0, 0, 1, 1], [], []>} : vector<512x128xbf16>, vector<128x4xbf16>, vector<512x4xf32> -> vector<512x4xf32>
    %c0_29 = arith.constant 0 : index
    %c0_30 = arith.constant 0 : index
    %38 = vector.load %arg7[%c0_29, %c0_30] : memref<512x4xf32, #tpu.memory_space<vmem>>, vector<512x4xf32>
    tpu.vector_store %arg7[%c0_29, %c0_30], %37 {strides = array<i32>} : memref<512x4xf32, #tpu.memory_space<vmem>>, vector<512x4xf32>,
    return
  }
  func.func @transform_0(%arg0: i32) -> (i32, i32) {
    %c0_i32 = arith.constant 0 : i32
    %c0_i32_0 = arith.constant 0 : i32
    return %arg0, %c0_i32 : i32, i32
  }
  func.func @transform_1(%arg0: i32) -> (i32, i32) {
    %c0_i32 = arith.constant 0 : i32
    %c0_i32_0 = arith.constant 0 : i32
    %c0_i32_1 = arith.constant 0 : i32
    return %c0_i32, %c0_i32_0 : i32, i32
  }
  func.func @transform_2(%arg0: i32) -> (i32, i32, i32) {
    %c0_i32 = arith.constant 0 : i32
    %c0_i32_0 = arith.constant 0 : i32
    %c0_i32_1 = arith.constant 0 : i32
    %c0_i32_2 = arith.constant 0 : i32
    return %c0_i32, %c0_i32_0, %c0_i32_1 : i32, i32, i32
  }
  func.func @transform_3(%arg0: i32) -> (i32, i32, i32) {
    %c0_i32 = arith.constant 0 : i32
    %c0_i32_0 = arith.constant 0 : i32
    %c0_i32_1 = arith.constant 0 : i32
    %c0_i32_2 = arith.constant 0 : i32
    return %c0_i32, %c0_i32_0, %c0_i32_1 : i32, i32, i32
  }
  func.func @transform_4(%arg0: i32) -> (i32, i32) {
    %c0_i32 = arith.constant 0 : i32
    %c0_i32_0 = arith.constant 0 : i32
    %c0_i32_1 = arith.constant 0 : i32
    return %c0_i32, %c0_i32_0 : i32, i32
  }
  func.func @transform_5(%arg0: i32) -> (i32, i32) {
    %c0_i32 = arith.constant 0 : i32
    %c0_i32_0 = arith.constant 0 : i32
    %c0_i32_1 = arith.constant 0 : i32
    return %c0_i32, %c0_i32_0 : i32, i32
  }
  func.func @transform_6(%arg0: i32) -> (i32, i32) {
    %c0_i32 = arith.constant 0 : i32
    %c0_i32_0 = arith.constant 0 : i32
    return %arg0, %c0_i32 : i32, i32
  }
}

</mosaic_0001>

<llo_original>
// kernel: hash_nerf_forward.1
$region0: #{hash_nerf_forward.1}
  #allocation0 [shape = 'u32[]', space=smem, size = 0x4, offset = 0x4, fixed_abs, tag = 'smem constant byte address 0x4 - core index']
  #allocation1 [shape = 'u32[72,128]{1,0:T(1,128)}', space=vmem, size = 0x9000, scoped, tag = 'internal scratch']
  %s0 = inlined_call_operand.vmem [shape: f32[1024,6], index: 0, kind: input, shape index: {}]
  %s1 = inlined_call_operand.vmem [shape: bf16[6,128], index: 1, kind: input, shape index: {}]
  %s2 = inlined_call_operand.vmem [shape: bf16[2,128,64], index: 2, kind: input, shape index: {}]
  %s3 = inlined_call_operand.vmem [shape: bf16[2,64,128], index: 3, kind: input, shape index: {}]
  %s4 = inlined_call_operand.vmem [shape: bf16[128,128], index: 4, kind: input, shape index: {}]
  %s5 = inlined_call_operand.vmem [shape: bf16[128,4], index: 5, kind: input, shape index: {}]
  %s6 = inlined_call_operand.vmem [shape: f32[1024,4], index: 6, kind: output, shape index: {}]
  %s7 = sld [smem:[#allocation0]]
  $region57: #{hash_nerf_forward.1} parent=0
    _
  %s9 = ssub.s32 1, %s7
  %s10 = scalar_select 0, %s9, %s7
  loop: start=0, step=1, limit=4
  $region2: #{hash_nerf_forward.1} parent=0 // loop_pre_header
    _
  $region3: #{hash_nerf_forward.1} parent=0 // loop_header
    %s12 = sphi 0, %s16
    %p13 = scmp.ge.s32.totalorder %s12, 4
    %s22 = sphi 0, %s24
    %s25 = sphi 0, %s22
    %s26 = sphi 0, %s25
    %s42 = sphi 0, %s26
    %s46 = sphi 0, %s46
    %s48 = sphi 0, %s46
    %s49 = sphi 0, %s48
    %s63 = sphi 0, %s49
    %s67 = sphi 0, %s67
    %s69 = sphi 0, %s67
    %s70 = sphi 0, %s69
    %s84 = sphi 0, %s70
    %s88 = sphi 0, %s88
    %s90 = sphi 0, %s88
    %s91 = sphi 0, %s90
    %s105 = sphi 0, %s91
    %s109 = sphi 0, %s109
    %s111 = sphi 0, %s109
    %s112 = sphi 0, %s111
    %s126 = sphi 0, %s112
    %s130 = sphi 0, %s130
    %s132 = sphi 0, %s130
    %s133 = sphi 0, %s132
    %s147 = sphi 0, %s133
    %s153 = sphi 0, %s155
    %s156 = sphi 0, %s153
    %s157 = sphi 0, %s156
    %s173 = sphi 0, %s157
  $region4: #{hash_nerf_forward.1} parent=0 // loop_header_branch
    %15 = sbr.rel (%p13) target = $region8
  $region5: #{hash_nerf_forward.1} parent=0 // loop_body
    %s17 = ssub.s32 %s12, 1
    %s18 = ssub.s32 %s12, 2
    %s19 = sadd.s32 %s12, 1
    %s20 = ssub.s32 %s12, %s19
    %p21 = scmp.eq.s32.totalorder %s20, 0
    %s23 = sadd.s32 %s22, 1
    %s24 = scalar_select %p21, %s22, %s23
    %p27 = pneg %p21
    %p28 = scmp.eq.s32.totalorder %s12, 1
    %p29 = por %p27, %p28
    %p30 = scmp.ne.s32.totalorder %s22, %s25
    %p31 = scmp.eq.s32.totalorder %s12, 0
    %p32 = por %p30, %p31
    %p33 = scmp.ne.s32.totalorder %s22, %s25
    %p34 = scmp.eq.s32.totalorder %s17, 1
    %p35 = por %p33, %p34
    %p36 = scmp.ne.s32.totalorder %s25, %s26
    %p37 = scmp.eq.s32.totalorder %s17, 0
    %p38 = por %p36, %p37
    %p39 = scmp.ne.s32.totalorder %s25, %s26
    %p40 = scmp.eq.s32.totalorder %s18, 1
    %p41 = por %p39, %p40
    %p43 = scmp.ne.s32.totalorder %s26, %s42
    %p44 = scmp.eq.s32.totalorder %s18, 0
    %p45 = por %p43, %p44
    %s47 = sadd.s32 %s46, 1
    %p50 = scmp.eq.s32.totalorder %s12, 1
    %p51 = scmp.ne.s32.totalorder %s46, %s48
    %p52 = scmp.eq.s32.totalorder %s12, 0
    %p53 = por %p51, %p52
    %p54 = scmp.ne.s32.totalorder %s46, %s48
    %p55 = scmp.eq.s32.totalorder %s17, 1
    %p56 = por %p54, %p55
    %p57 = scmp.ne.s32.totalorder %s48, %s49
    %p58 = scmp.eq.s32.totalorder %s17, 0
    %p59 = por %p57, %p58
    %p60 = scmp.ne.s32.totalorder %s48, %s49
    %p61 = scmp.eq.s32.totalorder %s18, 1
    %p62 = por %p60, %p61
    %p64 = scmp.ne.s32.totalorder %s49, %s63
    %p65 = scmp.eq.s32.totalorder %s18, 0
    %p66 = por %p64, %p65
    %s68 = sadd.s32 %s67, 1
    %p71 = scmp.eq.s32.totalorder %s12, 1
    %p72 = scmp.ne.s32.totalorder %s67, %s69
    %p73 = scmp.eq.s32.totalorder %s12, 0
    %p74 = por %p72, %p73
    %p75 = scmp.ne.s32.totalorder %s67, %s69
    %p76 = scmp.eq.s32.totalorder %s17, 1
    %p77 = por %p75, %p76
    %p78 = scmp.ne.s32.totalorder %s69, %s70
    %p79 = scmp.eq.s32.totalorder %s17, 0
    %p80 = por %p78, %p79
    %p81 = scmp.ne.s32.totalorder %s69, %s70
    %p82 = scmp.eq.s32.totalorder %s18, 1
    %p83 = por %p81, %p82
    %p85 = scmp.ne.s32.totalorder %s70, %s84
    %p86 = scmp.eq.s32.totalorder %s18, 0
    %p87 = por %p85, %p86
    %s89 = sadd.s32 %s88, 1
    %p92 = scmp.eq.s32.totalorder %s12, 1
    %p93 = scmp.ne.s32.totalorder %s88, %s90
    %p94 = scmp.eq.s32.totalorder %s12, 0
    %p95 = por %p93, %p94
    %p96 = scmp.ne.s32.totalorder %s88, %s90
    %p97 = scmp.eq.s32.totalorder %s17, 1
    %p98 = por %p96, %p97
    %p99 = scmp.ne.s32.totalorder %s90, %s91
    %p100 = scmp.eq.s32.totalorder %s17, 0
    %p101 = por %p99, %p100
    %p102 = scmp.ne.s32.totalorder %s90, %s91
    %p103 = scmp.eq.s32.totalorder %s18, 1
    %p104 = por %p102, %p103
    %p106 = scmp.ne.s32.totalorder %s91, %s105
    %p107 = scmp.eq.s32.totalorder %s18, 0
    %p108 = por %p106, %p107
    %s110 = sadd.s32 %s109, 1
    %p113 = scmp.eq.s32.totalorder %s12, 1
    %p114 = scmp.ne.s32.totalorder %s109, %s111
    %p115 = scmp.eq.s32.totalorder %s12, 0
    %p116 = por %p114, %p115
    %p117 = scmp.ne.s32.totalorder %s109, %s111
    %p118 = scmp.eq.s32.totalorder %s17, 1
    %p119 = por %p117, %p118
    %p120 = scmp.ne.s32.totalorder %s111, %s112
    %p121 = scmp.eq.s32.totalorder %s17, 0
    %p122 = por %p120, %p121
    %p123 = scmp.ne.s32.totalorder %s111, %s112
    %p124 = scmp.eq.s32.totalorder %s18, 1
    %p125 = por %p123, %p124
    %p127 = scmp.ne.s32.totalorder %s112, %s126
    %p128 = scmp.eq.s32.totalorder %s18, 0
    %p129 = por %p127, %p128
    %s131 = sadd.s32 %s130, 1
    %p134 = scmp.eq.s32.totalorder %s12, 1
    %p135 = scmp.ne.s32.totalorder %s130, %s132
    %p136 = scmp.eq.s32.totalorder %s12, 0
    %p137 = por %p135, %p136
    %p138 = scmp.ne.s32.totalorder %s130, %s132
    %p139 = scmp.eq.s32.totalorder %s17, 1
    %p140 = por %p138, %p139
    %p141 = scmp.ne.s32.totalorder %s132, %s133
    %p142 = scmp.eq.s32.totalorder %s17, 0
    %p143 = por %p141, %p142
    %p144 = scmp.ne.s32.totalorder %s132, %s133
    %p145 = scmp.eq.s32.totalorder %s18, 1
    %p146 = por %p144, %p145
    %p148 = scmp.ne.s32.totalorder %s133, %s147
    %p149 = scmp.eq.s32.totalorder %s18, 0
    %p150 = por %p148, %p149
    %s151 = ssub.s32 %s12, %s19
    %p152 = scmp.eq.s32.totalorder %s151, 0
    %s154 = sadd.s32 %s153, 1
    %s155 = scalar_select %p152, %s153, %s154
    %p158 = pneg %p152
    %p159 = scmp.eq.s32.totalorder %s12, 1
    %p160 = por %p158, %p159
    %p161 = scmp.ne.s32.totalorder %s153, %s156
    %p162 = scmp.eq.s32.totalorder %s12, 0
    %p163 = por %p161, %p162
    %p164 = scmp.ne.s32.totalorder %s153, %s156
    %p165 = scmp.eq.s32.totalorder %s17, 1
    %p166 = por %p164, %p165
    %p167 = scmp.ne.s32.totalorder %s156, %s157
    %p168 = scmp.eq.s32.totalorder %s17, 0
    %p169 = por %p167, %p168
    %p170 = scmp.ne.s32.totalorder %s156, %s157
    %p171 = scmp.eq.s32.totalorder %s18, 1
    %p172 = por %p170, %p171
    %p174 = scmp.ne.s32.totalorder %s157, %s173
    %p175 = scmp.eq.s32.totalorder %s18, 0
    %p176 = por %p174, %p175
    %p177 = scmp.le.s32.totalorder 1, %s12
    %p178 = scmp.lt.s32.totalorder %s12, 3
    %p179 = pnand %p177, %p178
    %p180 = pneg %p179
    // Predicated region
    $region9: #{hash_nerf_forward.1} parent=5 // pred_check
      _
    $region10: #{hash_nerf_forward.1} parent=5 // pred_check_branch
      %182 = sbr.rel (%p179) target = $region12
    $region11: #{hash_nerf_forward.1} parent=5 // pred_region
      %s183 = ssub.s32 %s12, 1
      // Predicated region
      $region13: #{hash_nerf_forward.1} parent=11 // pred_check
        %p184 = pneg %p59
      $region14: #{hash_nerf_forward.1} parent=11 // pred_check_branch
        %186 = sbr.rel (%p184) target = $region16
      $region15: #{hash_nerf_forward.1} parent=11 // pred_region
        _
      $region16: #{hash_nerf_forward.1} parent=11 // pred_fallthru
        _
      // Predicated region
      $region17: #{hash_nerf_forward.1} parent=11 // pred_check
        %p187 = pneg %p80
      $region18: #{hash_nerf_forward.1} parent=11 // pred_check_branch
        %189 = sbr.rel (%p187) target = $region20
      $region19: #{hash_nerf_forward.1} parent=11 // pred_region
        _
      $region20: #{hash_nerf_forward.1} parent=11 // pred_fallthru
        _
      // Predicated region
      $region21: #{hash_nerf_forward.1} parent=11 // pred_check
        %p190 = pneg %p101
      $region22: #{hash_nerf_forward.1} parent=11 // pred_check_branch
        %192 = sbr.rel (%p190) target = $region24
      $region23: #{hash_nerf_forward.1} parent=11 // pred_region
        _
      $region24: #{hash_nerf_forward.1} parent=11 // pred_fallthru
        _
      // Predicated region
      $region25: #{hash_nerf_forward.1} parent=11 // pred_check
        %p193 = pneg %p122
      $region26: #{hash_nerf_forward.1} parent=11 // pred_check_branch
        %195 = sbr.rel (%p193) target = $region28
      $region27: #{hash_nerf_forward.1} parent=11 // pred_region
        _
      $region28: #{hash_nerf_forward.1} parent=11 // pred_fallthru
        _
      // Predicated region
      $region29: #{hash_nerf_forward.1} parent=11 // pred_check
        %p196 = pneg %p143
      $region30: #{hash_nerf_forward.1} parent=11 // pred_check_branch
        %198 = sbr.rel (%p196) target = $region32
      $region31: #{hash_nerf_forward.1} parent=11 // pred_region
        _
      $region32: #{hash_nerf_forward.1} parent=11 // pred_fallthru
        _
    $region12: #{hash_nerf_forward.1} parent=5 // pred_fallthru
      _
    %p199 = scmp.lt.s32.totalorder %s12, 2
    // Predicated region
    $region33: #{hash_nerf_forward.1} parent=5 // pred_check
      %p200 = pneg %p199
    $region34: #{hash_nerf_forward.1} parent=5 // pred_check_branch
      %202 = sbr.rel (%p200) target = $region36
    $region35: #{hash_nerf_forward.1} parent=5 // pred_region
      // Predicated region
      $region37: #{hash_nerf_forward.1} parent=35 // pred_check
        %p203 = pneg %p32
      $region38: #{hash_nerf_forward.1} parent=35 // pred_check_branch
        %205 = sbr.rel (%p203) target = $region40
      $region39: #{hash_nerf_forward.1} parent=35 // pred_region
        %s206 = smul.u32 64, %s12
        %p207 = scmp.lt.s32.totalorder %s206, 127
        %s208 = scalar_select %p207, %s206, 127
        %s209 = smul.addr %s208, 8
        %s210 = scalar_lea.vmem %s0, %s209
        %s211 = smul.u32 64, %s12
      $region40: #{hash_nerf_forward.1} parent=35 // pred_fallthru
        _
    $region36: #{hash_nerf_forward.1} parent=5 // pred_fallthru
      _
    %p212 = scmp.le.s32.totalorder 1, %s12
    %p213 = scmp.lt.s32.totalorder %s12, 3
    %p214 = pnand %p212, %p213
    %p215 = pneg %p214
    // Predicated region
    $region41: #{hash_nerf_forward.1} parent=5 // pred_check
      _
    $region42: #{hash_nerf_forward.1} parent=5 // pred_check_branch
      %217 = sbr.rel (%p214) target = $region44
    $region43: #{hash_nerf_forward.1} parent=5 // pred_region
      %s218 = ssub.s32 %s12, 1
      %s219 = smul.u32 64, %s17
      %p220 = scmp.lt.s32.totalorder %s219, 127
      %s221 = scalar_select %p220, %s219, 127
      %s222 = smul.addr %s221, 8
      %s223 = scalar_lea.vmem %s0, %s222
      %p224 = pneg %p38
      %p225 = pneg %p35
      %p226 = pneg %p59
      %p227 = pneg %p56
      %p228 = pneg %p80
      %p229 = pneg %p77
      %p230 = pneg %p101
      %p231 = pneg %p98
      %p232 = pneg %p122
      %p233 = pneg %p119
      %p234 = pneg %p143
      %p235 = pneg %p140
      %p236 = pneg %p169
      %p237 = pneg %p166
      %s238 = smul.u32 64, %s17
      %p239 = scmp.lt.s32.totalorder %s238, 127
      %s240 = scalar_select %p239, %s238, 127
      %s241 = smul.addr %s240, 8
      %s242 = scalar_lea.vmem %s6, %s241
      %s243 = smul.u32 64, %s17
      %p244 = scmp.lt.s32.totalorder %s243, 127
      %s245 = scalar_select %p244, %s243, 127
      %s246 = smul.addr %s245, 8
      %s247 = scalar_lea.vmem %s0, %s246
      %s248 = smul.u32 64, %s17
      %s249 = smul.u32 64, %s17
      %p250 = scmp.lt.s32.totalorder %s249, 127
      %s251 = scalar_select %p250, %s249, 127
      %s252 = smul.addr %s251, 8
      %s253 = scalar_lea.vmem %s6, %s252
      %s254 = smul.u32 64, %s17
      %v256 = vld [vmem:[%s247] sm:$0xff]
      %v257 = vld [vmem:[%s247 + $0x8] sm:$0xff]
      %v258 = vld [vmem:[%s247 + $0x10] sm:$0xff]
      %v259 = vld [vmem:[%s247 + $0x18] sm:$0xff]
      %v260 = vld [vmem:[%s247 + $0x20] sm:$0xff]
      %v261 = vld [vmem:[%s247 + $0x28] sm:$0xff]
      %v262 = vld [vmem:[%s247 + $0x30] sm:$0xff]
      %v263 = vld [vmem:[%s247 + $0x38] sm:$0xff]
      %v264 = vld [vmem:[%s247 + $0x40] sm:$0xff]
      %v265 = vld [vmem:[%s247 + $0x48] sm:$0xff]
      %v266 = vld [vmem:[%s247 + $0x50] sm:$0xff]
      %v267 = vld [vmem:[%s247 + $0x58] sm:$0xff]
      %v268 = vld [vmem:[%s247 + $0x60] sm:$0xff]
      %v269 = vld [vmem:[%s247 + $0x68] sm:$0xff]
      %v270 = vld [vmem:[%s247 + $0x70] sm:$0xff]
      %v271 = vld [vmem:[%s247 + $0x78] sm:$0xff]
      %v272 = vld [vmem:[%s247 + $0x80] sm:$0xff]
      %v273 = vld [vmem:[%s247 + $0x88] sm:$0xff]
      %v274 = vld [vmem:[%s247 + $0x90] sm:$0xff]
      %v275 = vld [vmem:[%s247 + $0x98] sm:$0xff]
      %v276 = vld [vmem:[%s247 + $0xa0] sm:$0xff]
      %v277 = vld [vmem:[%s247 + $0xa8] sm:$0xff]
      %v278 = vld [vmem:[%s247 + $0xb0] sm:$0xff]
      %v279 = vld [vmem:[%s247 + $0xb8] sm:$0xff]
      %v280 = vld [vmem:[%s247 + $0xc0] sm:$0xff]
      %v281 = vld [vmem:[%s247 + $0xc8] sm:$0xff]
      %v282 = vld [vmem:[%s247 + $0xd0] sm:$0xff]
      %v283 = vld [vmem:[%s247 + $0xd8] sm:$0xff]
      %v284 = vld [vmem:[%s247 + $0xe0] sm:$0xff]
      %v285 = vld [vmem:[%s247 + $0xe8] sm:$0xff]
      %v286 = vld [vmem:[%s247 + $0xf0] sm:$0xff]
      %v287 = vld [vmem:[%s247 + $0xf8] sm:$0xff]
      %v288 = vld [vmem:[%s247 + $0x100] sm:$0xff]
      %v289 = vld [vmem:[%s247 + $0x108] sm:$0xff]
      %v290 = vld [vmem:[%s247 + $0x110] sm:$0xff]
      %v291 = vld [vmem:[%s247 + $0x118] sm:$0xff]
      %v292 = vld [vmem:[%s247 + $0x120] sm:$0xff]
      %v293 = vld [vmem:[%s247 + $0x128] sm:$0xff]
      %v294 = vld [vmem:[%s247 + $0x130] sm:$0xff]
      %v295 = vld [vmem:[%s247 + $0x138] sm:$0xff]
      %v296 = vld [vmem:[%s247 + $0x140] sm:$0xff]
      %v297 = vld [vmem:[%s247 + $0x148] sm:$0xff]
      %v298 = vld [vmem:[%s247 + $0x150] sm:$0xff]
      %v299 = vld [vmem:[%s247 + $0x158] sm:$0xff]
      %v300 = vld [vmem:[%s247 + $0x160] sm:$0xff]
      %v301 = vld [vmem:[%s247 + $0x168] sm:$0xff]
      %v302 = vld [vmem:[%s247 + $0x170] sm:$0xff]
      %v303 = vld [vmem:[%s247 + $0x178] sm:$0xff]
      %v304 = vld [vmem:[%s247 + $0x180] sm:$0xff]
      %v305 = vld [vmem:[%s247 + $0x188] sm:$0xff]
      %v306 = vld [vmem:[%s247 + $0x190] sm:$0xff]
      %v307 = vld [vmem:[%s247 + $0x198] sm:$0xff]
      %v308 = vld [vmem:[%s247 + $0x1a0] sm:$0xff]
      %v309 = vld [vmem:[%s247 + $0x1a8] sm:$0xff]
      %v310 = vld [vmem:[%s247 + $0x1b0] sm:$0xff]
      %v311 = vld [vmem:[%s247 + $0x1b8] sm:$0xff]
      %v312 = vld [vmem:[%s247 + $0x1c0] sm:$0xff]
      %v313 = vld [vmem:[%s247 + $0x1c8] sm:$0xff]
      %v314 = vld [vmem:[%s247 + $0x1d0] sm:$0xff]
      %v315 = vld [vmem:[%s247 + $0x1d8] sm:$0xff]
      %v316 = vld [vmem:[%s247 + $0x1e0] sm:$0xff]
      %v317 = vld [vmem:[%s247 + $0x1e8] sm:$0xff]
      %v318 = vld [vmem:[%s247 + $0x1f0] sm:$0xff]
      %v319 = vld [vmem:[%s247 + $0x1f8] sm:$0xff]
      %v320 = vpack.c.bf16 %v257, %v256
      %v321 = vpack.c.bf16 %v259, %v258
      %v322 = vpack.c.bf16 %v261, %v260
      %v323 = vpack.c.bf16 %v263, %v262
      %v324 = vpack.c.bf16 %v265, %v264
      %v325 = vpack.c.bf16 %v267, %v266
      %v326 = vpack.c.bf16 %v269, %v268
      %v327 = vpack.c.bf16 %v271, %v270
      %v328 = vpack.c.bf16 %v273, %v272
      %v329 = vpack.c.bf16 %v275, %v274
      %v330 = vpack.c.bf16 %v277, %v276
      %v331 = vpack.c.bf16 %v279, %v278
      %v332 = vpack.c.bf16 %v281, %v280
      %v333 = vpack.c.bf16 %v283, %v282
      %v334 = vpack.c.bf16 %v285, %v284
      %v335 = vpack.c.bf16 %v287, %v286
      %v336 = vpack.c.bf16 %v289, %v288
      %v337 = vpack.c.bf16 %v291, %v290
      %v338 = vpack.c.bf16 %v293, %v292
      %v339 = vpack.c.bf16 %v295, %v294
      %v340 = vpack.c.bf16 %v297, %v296
      %v341 = vpack.c.bf16 %v299, %v298
      %v342 = vpack.c.bf16 %v301, %v300
      %v343 = vpack.c.bf16 %v303, %v302
      %v344 = vpack.c.bf16 %v305, %v304
      %v345 = vpack.c.bf16 %v307, %v306
      %v346 = vpack.c.bf16 %v309, %v308
      %v347 = vpack.c.bf16 %v311, %v310
      %v348 = vpack.c.bf16 %v313, %v312
      %v349 = vpack.c.bf16 %v315, %v314
      %v350 = vpack.c.bf16 %v317, %v316
      %v351 = vpack.c.bf16 %v319, %v318
      %v352 = vld [vmem:[%s1] sm:$0x7]
      %vm353 = vcmask 48128
      %v355 = vsel %vm353, %v320, 0
      %v358 = vsel %vm353, %v321, 0
      %v361 = vsel %vm353, %v322, 0
      %v364 = vsel %vm353, %v323, 0
      %v367 = vsel %vm353, %v324, 0
      %v370 = vsel %vm353, %v325, 0
      %v373 = vsel %vm353, %v326, 0
      %v376 = vsel %vm353, %v327, 0
      %v379 = vsel %vm353, %v328, 0
      %v382 = vsel %vm353, %v329, 0
      %v385 = vsel %vm353, %v330, 0
      %v388 = vsel %vm353, %v331, 0
      %v391 = vsel %vm353, %v332, 0
      %v394 = vsel %vm353, %v333, 0
      %v397 = vsel %vm353, %v334, 0
      %v400 = vsel %vm353, %v335, 0
      %v403 = vsel %vm353, %v336, 0
      %v406 = vsel %vm353, %v337, 0
      %v409 = vsel %vm353, %v338, 0
      %v412 = vsel %vm353, %v339, 0
      %v415 = vsel %vm353, %v340, 0
      %v418 = vsel %vm353, %v341, 0
      %v421 = vsel %vm353, %v342, 0
      %v424 = vsel %vm353, %v343, 0
      %v427 = vsel %vm353, %v344, 0
      %v430 = vsel %vm353, %v345, 0
      %v433 = vsel %vm353, %v346, 0
      %v436 = vsel %vm353, %v347, 0
      %v439 = vsel %vm353, %v348, 0
      %v442 = vsel %vm353, %v349, 0
      %v445 = vsel %vm353, %v350, 0
      %v448 = vsel %vm353, %v351, 0
      %vm450 = vcmask 1042432
      %v452 = vsel %vm450, %v352, 0
      %454 = vmatpush.bf16.msra.mxu0 0
      %455 = vmatpush.bf16.msra.mxu0 0
      %456 = vmatpush.bf16.msra.mxu0 0
      %457 = vmatpush.bf16.msra.mxu0 0
      %458 = vmatpush.bf16.msra.mxu0 0
      %459 = vmatpush.bf16.msra.mxu0 0
      %460 = vmatpush.bf16.msra.mxu0 0
      %461 = vmatpush.bf16.msra.mxu0 %v452
      %462 = vmatmul.bf16.gmra.mxu0 %v355
      %v463 = vpop.f32.mrf.mxu0
      %v464 = vadd.f32 0.0, %v463
      %v465 = vpop.f32.mrf.mxu0
      %v466 = vadd.f32 0.0, %v465
      %467 = vmatmul.bf16.gmra.mxu0 %v358
      %v468 = vpop.f32.mrf.mxu0
      %v469 = vadd.f32 0.0, %v468
      %v470 = vpop.f32.mrf.mxu0
      %v471 = vadd.f32 0.0, %v470
      %472 = vmatmul.bf16.gmra.mxu0 %v361
      %v473 = vpop.f32.mrf.mxu0
      %v474 = vadd.f32 0.0, %v473
      %v475 = vpop.f32.mrf.mxu0
      %v476 = vadd.f32 0.0, %v475
      %477 = vmatmul.bf16.gmra.mxu0 %v364
      %v478 = vpop.f32.mrf.mxu0
      %v479 = vadd.f32 0.0, %v478
      %v480 = vpop.f32.mrf.mxu0
      %v481 = vadd.f32 0.0, %v480
      %482 = vmatmul.bf16.gmra.mxu0 %v367
      %v483 = vpop.f32.mrf.mxu0
      %v484 = vadd.f32 0.0, %v483
      %v485 = vpop.f32.mrf.mxu0
      %v486 = vadd.f32 0.0, %v485
      %487 = vmatmul.bf16.gmra.mxu0 %v370
      %v488 = vpop.f32.mrf.mxu0
      %v489 = vadd.f32 0.0, %v488
      %v490 = vpop.f32.mrf.mxu0
      %v491 = vadd.f32 0.0, %v490
      %492 = vmatmul.bf16.gmra.mxu0 %v373
      %v493 = vpop.f32.mrf.mxu0
      %v494 = vadd.f32 0.0, %v493
      %v495 = vpop.f32.mrf.mxu0
      %v496 = vadd.f32 0.0, %v495
      %497 = vmatmul.bf16.gmra.mxu0 %v376
      %v498 = vpop.f32.mrf.mxu0
      %v499 = vadd.f32 0.0, %v498
      %v500 = vpop.f32.mrf.mxu0
      %v501 = vadd.f32 0.0, %v500
      %502 = vmatmul.bf16.gmra.mxu0 %v379
      %v503 = vpop.f32.mrf.mxu0
      %v504 = vadd.f32 0.0, %v503
      %v505 = vpop.f32.mrf.mxu0
      %v506 = vadd.f32 0.0, %v505
      %507 = vmatmul.bf16.gmra.mxu0 %v382
      %v508 = vpop.f32.mrf.mxu0
      %v509 = vadd.f32 0.0, %v508
      %v510 = vpop.f32.mrf.mxu0
      %v511 = vadd.f32 0.0, %v510
      %512 = vmatmul.bf16.gmra.mxu0 %v385
      %v513 = vpop.f32.mrf.mxu0
      %v514 = vadd.f32 0.0, %v513
      %v515 = vpop.f32.mrf.mxu0
      %v516 = vadd.f32 0.0, %v515
      %517 = vmatmul.bf16.gmra.mxu0 %v388
      %v518 = vpop.f32.mrf.mxu0
      %v519 = vadd.f32 0.0, %v518
      %v520 = vpop.f32.mrf.mxu0
      %v521 = vadd.f32 0.0, %v520
      %522 = vmatmul.bf16.gmra.mxu0 %v391
      %v523 = vpop.f32.mrf.mxu0
      %v524 = vadd.f32 0.0, %v523
      %v525 = vpop.f32.mrf.mxu0
      %v526 = vadd.f32 0.0, %v525
      %527 = vmatmul.bf16.gmra.mxu0 %v394
      %v528 = vpop.f32.mrf.mxu0
      %v529 = vadd.f32 0.0, %v528
      %v530 = vpop.f32.mrf.mxu0
      %v531 = vadd.f32 0.0, %v530
      %532 = vmatmul.bf16.gmra.mxu0 %v397
      %v533 = vpop.f32.mrf.mxu0
      %v534 = vadd.f32 0.0, %v533
      %v535 = vpop.f32.mrf.mxu0
      %v536 = vadd.f32 0.0, %v535
      %537 = vmatmul.bf16.gmra.mxu0 %v400
      %v538 = vpop.f32.mrf.mxu0
      %v539 = vadd.f32 0.0, %v538
      %v540 = vpop.f32.mrf.mxu0
      %v541 = vadd.f32 0.0, %v540
      %542 = vmatmul.bf16.gmra.mxu0 %v403
      %v543 = vpop.f32.mrf.mxu0
      %v544 = vadd.f32 0.0, %v543
      %v545 = vpop.f32.mrf.mxu0
      %v546 = vadd.f32 0.0, %v545
      %547 = vmatmul.bf16.gmra.mxu0 %v406
      %v548 = vpop.f32.mrf.mxu0
      %v549 = vadd.f32 0.0, %v548
      %v550 = vpop.f32.mrf.mxu0
      %v551 = vadd.f32 0.0, %v550
      %552 = vmatmul.bf16.gmra.mxu0 %v409
      %v553 = vpop.f32.mrf.mxu0
      %v554 = vadd.f32 0.0, %v553
      %v555 = vpop.f32.mrf.mxu0
      %v556 = vadd.f32 0.0, %v555
      %557 = vmatmul.bf16.gmra.mxu0 %v412
      %v558 = vpop.f32.mrf.mxu0
      %v559 = vadd.f32 0.0, %v558
      %v560 = vpop.f32.mrf.mxu0
      %v561 = vadd.f32 0.0, %v560
      %562 = vmatmul.bf16.gmra.mxu0 %v415
      %v563 = vpop.f32.mrf.mxu0
      %v564 = vadd.f32 0.0, %v563
      %v565 = vpop.f32.mrf.mxu0
      %v566 = vadd.f32 0.0, %v565
      %567 = vmatmul.bf16.gmra.mxu0 %v418
      %v568 = vpop.f32.mrf.mxu0
      %v569 = vadd.f32 0.0, %v568
      %v570 = vpop.f32.mrf.mxu0
      %v571 = vadd.f32 0.0, %v570
      %572 = vmatmul.bf16.gmra.mxu0 %v421
      %v573 = vpop.f32.mrf.mxu0
      %v574 = vadd.f32 0.0, %v573
      %v575 = vpop.f32.mrf.mxu0
      %v576 = vadd.f32 0.0, %v575
      %577 = vmatmul.bf16.gmra.mxu0 %v424
      %v578 = vpop.f32.mrf.mxu0
      %v579 = vadd.f32 0.0, %v578
      %v580 = vpop.f32.mrf.mxu0
      %v581 = vadd.f32 0.0, %v580
      %582 = vmatmul.bf16.gmra.mxu0 %v427
      %v583 = vpop.f32.mrf.mxu0
      %v584 = vadd.f32 0.0, %v583
      %v585 = vpop.f32.mrf.mxu0
      %v586 = vadd.f32 0.0, %v585
      %587 = vmatmul.bf16.gmra.mxu0 %v430
      %v588 = vpop.f32.mrf.mxu0
      %v589 = vadd.f32 0.0, %v588
      %v590 = vpop.f32.mrf.mxu0
      %v591 = vadd.f32 0.0, %v590
      %592 = vmatmul.bf16.gmra.mxu0 %v433
      %v593 = vpop.f32.mrf.mxu0
      %v594 = vadd.f32 0.0, %v593
      %v595 = vpop.f32.mrf.mxu0
      %v596 = vadd.f32 0.0, %v595
      %597 = vmatmul.bf16.gmra.mxu0 %v436
      %v598 = vpop.f32.mrf.mxu0
      %v599 = vadd.f32 0.0, %v598
      %v600 = vpop.f32.mrf.mxu0
      %v601 = vadd.f32 0.0, %v600
      %602 = vmatmul.bf16.gmra.mxu0 %v439
      %v603 = vpop.f32.mrf.mxu0
      %v604 = vadd.f32 0.0, %v603
      %v605 = vpop.f32.mrf.mxu0
      %v606 = vadd.f32 0.0, %v605
      %607 = vmatmul.bf16.gmra.mxu0 %v442
      %v608 = vpop.f32.mrf.mxu0
      %v609 = vadd.f32 0.0, %v608
      %v610 = vpop.f32.mrf.mxu0
      %v611 = vadd.f32 0.0, %v610
      %612 = vmatmul.bf16.gmra.mxu0 %v445
      %v613 = vpop.f32.mrf.mxu0
      %v614 = vadd.f32 0.0, %v613
      %v615 = vpop.f32.mrf.mxu0
      %v616 = vadd.f32 0.0, %v615
      %617 = vmatmul.bf16.gmra.mxu0 %v448
      %v618 = vpop.f32.mrf.mxu0
      %v619 = vadd.f32 0.0, %v618
      %v620 = vpop.f32.mrf.mxu0
      %v621 = vadd.f32 0.0, %v620
      %622 = vdwg.mxu0
      %v623 = vmax.f32 %v464, 0.0
      %v624 = vmax.f32 %v466, 0.0
      %v625 = vmax.f32 %v469, 0.0
      %v626 = vmax.f32 %v471, 0.0
      %v627 = vmax.f32 %v474, 0.0
      %v628 = vmax.f32 %v476, 0.0
      %v629 = vmax.f32 %v479, 0.0
      %v630 = vmax.f32 %v481, 0.0
      %v631 = vmax.f32 %v484, 0.0
      %v632 = vmax.f32 %v486, 0.0
      %v633 = vmax.f32 %v489, 0.0
      %v634 = vmax.f32 %v491, 0.0
      %v635 = vmax.f32 %v494, 0.0
      %v636 = vmax.f32 %v496, 0.0
      %v637 = vmax.f32 %v499, 0.0
      %v638 = vmax.f32 %v501, 0.0
      %v639 = vmax.f32 %v504, 0.0
      %v640 = vmax.f32 %v506, 0.0
      %v641 = vmax.f32 %v509, 0.0
      %v642 = vmax.f32 %v511, 0.0
      %v643 = vmax.f32 %v514, 0.0
      %v644 = vmax.f32 %v516, 0.0
      %v645 = vmax.f32 %v519, 0.0
      %v646 = vmax.f32 %v521, 0.0
      %v647 = vmax.f32 %v524, 0.0
      %v648 = vmax.f32 %v526, 0.0
      %v649 = vmax.f32 %v529, 0.0
      %v650 = vmax.f32 %v531, 0.0
      %v651 = vmax.f32 %v534, 0.0
      %v652 = vmax.f32 %v536, 0.0
      %v653 = vmax.f32 %v539, 0.0
      %v654 = vmax.f32 %v541, 0.0
      %v655 = vmax.f32 %v544, 0.0
      %v656 = vmax.f32 %v546, 0.0
      %v657 = vmax.f32 %v549, 0.0
      %v658 = vmax.f32 %v551, 0.0
      %v659 = vmax.f32 %v554, 0.0
      %v660 = vmax.f32 %v556, 0.0
      %v661 = vmax.f32 %v559, 0.0
      %v662 = vmax.f32 %v561, 0.0
      %v663 = vmax.f32 %v564, 0.0
      %v664 = vmax.f32 %v566, 0.0
      %v665 = vmax.f32 %v569, 0.0
      %v666 = vmax.f32 %v571, 0.0
      %v667 = vmax.f32 %v574, 0.0
      %v668 = vmax.f32 %v576, 0.0
      %v669 = vmax.f32 %v579, 0.0
      %v670 = vmax.f32 %v581, 0.0
      %v671 = vmax.f32 %v584, 0.0
      %v672 = vmax.f32 %v586, 0.0
      %v673 = vmax.f32 %v589, 0.0
      %v674 = vmax.f32 %v591, 0.0
      %v675 = vmax.f32 %v594, 0.0
      %v676 = vmax.f32 %v596, 0.0
      %v677 = vmax.f32 %v599, 0.0
      %v678 = vmax.f32 %v601, 0.0
      %v679 = vmax.f32 %v604, 0.0
      %v680 = vmax.f32 %v606, 0.0
      %v681 = vmax.f32 %v609, 0.0
      %v682 = vmax.f32 %v611, 0.0
      %v683 = vmax.f32 %v614, 0.0
      %v684 = vmax.f32 %v616, 0.0
      %v685 = vmax.f32 %v619, 0.0
      %v686 = vmax.f32 %v621, 0.0
      %v687 = vpack.c.bf16 %v624, %v623
      %v688 = vpack.c.bf16 %v626, %v625
      %v689 = vpack.c.bf16 %v628, %v627
      %v690 = vpack.c.bf16 %v630, %v629
      %v691 = vpack.c.bf16 %v632, %v631
      %v692 = vpack.c.bf16 %v634, %v633
      %v693 = vpack.c.bf16 %v636, %v635
      %v694 = vpack.c.bf16 %v638, %v637
      %v695 = vpack.c.bf16 %v640, %v639
      %v696 = vpack.c.bf16 %v642, %v641
      %v697 = vpack.c.bf16 %v644, %v643
      %v698 = vpack.c.bf16 %v646, %v645
      %v699 = vpack.c.bf16 %v648, %v647
      %v700 = vpack.c.bf16 %v650, %v649
      %v701 = vpack.c.bf16 %v652, %v651
      %v702 = vpack.c.bf16 %v654, %v653
      %v703 = vpack.c.bf16 %v656, %v655
      %v704 = vpack.c.bf16 %v658, %v657
      %v705 = vpack.c.bf16 %v660, %v659
      %v706 = vpack.c.bf16 %v662, %v661
      %v707 = vpack.c.bf16 %v664, %v663
      %v708 = vpack.c.bf16 %v666, %v665
      %v709 = vpack.c.bf16 %v668, %v667
      %v710 = vpack.c.bf16 %v670, %v669
      %v711 = vpack.c.bf16 %v672, %v671
      %v712 = vpack.c.bf16 %v674, %v673
      %v713 = vpack.c.bf16 %v676, %v675
      %v714 = vpack.c.bf16 %v678, %v677
      %v715 = vpack.c.bf16 %v680, %v679
      %v716 = vpack.c.bf16 %v682, %v681
      %v717 = vpack.c.bf16 %v684, %v683
      %v718 = vpack.c.bf16 %v686, %v685
      %v719 = vld [vmem:[%s2] sm:$0xf]
      %v720 = vld [vmem:[%s2 + $0x4] sm:$0xf]
      %v721 = vld [vmem:[%s2 + $0x8] sm:$0xf]
      %v722 = vld [vmem:[%s2 + $0xc] sm:$0xf]
      %v723 = vld [vmem:[%s2 + $0x10] sm:$0xf]
      %v724 = vld [vmem:[%s2 + $0x14] sm:$0xf]
      %v725 = vld [vmem:[%s2 + $0x18] sm:$0xf]
      %v726 = vld [vmem:[%s2 + $0x1c] sm:$0xf]
      %v727 = vld [vmem:[%s2 + $0x20] sm:$0xf]
      %v728 = vld [vmem:[%s2 + $0x24] sm:$0xf]
      %v729 = vld [vmem:[%s2 + $0x28] sm:$0xf]
      %v730 = vld [vmem:[%s2 + $0x2c] sm:$0xf]
      %v731 = vld [vmem:[%s2 + $0x30] sm:$0xf]
      %v732 = vld [vmem:[%s2 + $0x34] sm:$0xf]
      %v733 = vld [vmem:[%s2 + $0x38] sm:$0xf]
      %v734 = vld [vmem:[%s2 + $0x3c] sm:$0xf]
      %v751 = vunpack.c.l.b16 %v719
      %v752 = vunpack.c.l.b16 %v720
      %v753 = vunpack.c.l.b16 %v721
      %v754 = vunpack.c.l.b16 %v722
      %v755 = vunpack.c.l.b16 %v723
      %v756 = vunpack.c.l.b16 %v724
      %v757 = vunpack.c.l.b16 %v725
      %v758 = vunpack.c.l.b16 %v726
      %v759 = vunpack.c.l.b16 %v727
      %v760 = vunpack.c.l.b16 %v728
      %v761 = vunpack.c.l.b16 %v729
      %v762 = vunpack.c.l.b16 %v730
      %v763 = vunpack.c.l.b16 %v731
      %v764 = vunpack.c.l.b16 %v732
      %v765 = vunpack.c.l.b16 %v733
      %v766 = vunpack.c.l.b16 %v734
      %v767 = vpack.c.b16 %v752, %v751
      %v768 = vpack.c.b16 %v754, %v753
      %v769 = vpack.c.b16 %v756, %v755
      %v770 = vpack.c.b16 %v758, %v757
      %v771 = vpack.c.b16 %v760, %v759
      %v772 = vpack.c.b16 %v762, %v761
      %v773 = vpack.c.b16 %v764, %v763
      %v774 = vpack.c.b16 %v766, %v765
      %783 = vmatpush.bf16.msra.mxu0 %v774
      %784 = vmatpush.bf16.msra.mxu0 %v773
      %785 = vmatpush.bf16.msra.mxu0 %v772
      %786 = vmatpush.bf16.msra.mxu0 %v771
      %787 = vmatpush.bf16.msra.mxu0 %v770
      %788 = vmatpush.bf16.msra.mxu0 %v769
      %789 = vmatpush.bf16.msra.mxu0 %v768
      %790 = vmatpush.bf16.msra.mxu0 %v767
      %791 = vmatmul.bf16.gmra.mxu0 %v687
      %v792 = vpop.f32.mrf.mxu0
      %v793 = vadd.f32 0.0, %v792
      %v794 = vpop.f32.mrf.mxu0
      %v795 = vadd.f32 0.0, %v794
      %796 = vmatmul.bf16.gmra.mxu0 %v688
      %v797 = vpop.f32.mrf.mxu0
      %v798 = vadd.f32 0.0, %v797
      %v799 = vpop.f32.mrf.mxu0
      %v800 = vadd.f32 0.0, %v799
      %801 = vmatmul.bf16.gmra.mxu0 %v689
      %v802 = vpop.f32.mrf.mxu0
      %v803 = vadd.f32 0.0, %v802
      %v804 = vpop.f32.mrf.mxu0
      %v805 = vadd.f32 0.0, %v804
      %806 = vmatmul.bf16.gmra.mxu0 %v690
      %v807 = vpop.f32.mrf.mxu0
      %v808 = vadd.f32 0.0, %v807
      %v809 = vpop.f32.mrf.mxu0
      %v810 = vadd.f32 0.0, %v809
      %811 = vmatmul.bf16.gmra.mxu0 %v691
      %v812 = vpop.f32.mrf.mxu0
      %v813 = vadd.f32 0.0, %v812
      %v814 = vpop.f32.mrf.mxu0
      %v815 = vadd.f32 0.0, %v814
      %816 = vmatmul.bf16.gmra.mxu0 %v692
      %v817 = vpop.f32.mrf.mxu0
      %v818 = vadd.f32 0.0, %v817
      %v819 = vpop.f32.mrf.mxu0
      %v820 = vadd.f32 0.0, %v819
      %821 = vmatmul.bf16.gmra.mxu0 %v693
      %v822 = vpop.f32.mrf.mxu0
      %v823 = vadd.f32 0.0, %v822
      %v824 = vpop.f32.mrf.mxu0
      %v825 = vadd.f32 0.0, %v824
      %826 = vmatmul.bf16.gmra.mxu0 %v694
      %v827 = vpop.f32.mrf.mxu0
      %v828 = vadd.f32 0.0, %v827
      %v829 = vpop.f32.mrf.mxu0
      %v830 = vadd.f32 0.0, %v829
      %831 = vmatmul.bf16.gmra.mxu0 %v695
      %v832 = vpop.f32.mrf.mxu0
      %v833 = vadd.f32 0.0, %v832
      %v834 = vpop.f32.mrf.mxu0
      %v835 = vadd.f32 0.0, %v834
      %836 = vmatmul.bf16.gmra.mxu0 %v696
      %v837 = vpop.f32.mrf.mxu0
      %v838 = vadd.f32 0.0, %v837
      %v839 = vpop.f32.mrf.mxu0
      %v840 = vadd.f32 0.0, %v839
      %841 = vmatmul.bf16.gmra.mxu0 %v697
      %v842 = vpop.f32.mrf.mxu0
      %v843 = vadd.f32 0.0, %v842
      %v844 = vpop.f32.mrf.mxu0
      %v845 = vadd.f32 0.0, %v844
      %846 = vmatmul.bf16.gmra.mxu0 %v698
      %v847 = vpop.f32.mrf.mxu0
      %v848 = vadd.f32 0.0, %v847
      %v849 = vpop.f32.mrf.mxu0
      %v850 = vadd.f32 0.0, %v849
      %851 = vmatmul.bf16.gmra.mxu0 %v699
      %v852 = vpop.f32.mrf.mxu0
      %v853 = vadd.f32 0.0, %v852
      %v854 = vpop.f32.mrf.mxu0
      %v855 = vadd.f32 0.0, %v854
      %856 = vmatmul.bf16.gmra.mxu0 %v700
      %v857 = vpop.f32.mrf.mxu0
      %v858 = vadd.f32 0.0, %v857
      %v859 = vpop.f32.mrf.mxu0
      %v860 = vadd.f32 0.0, %v859
      %861 = vmatmul.bf16.gmra.mxu0 %v701
      %v862 = vpop.f32.mrf.mxu0
      %v863 = vadd.f32 0.0, %v862
      %v864 = vpop.f32.mrf.mxu0
      %v865 = vadd.f32 0.0, %v864
      %866 = vmatmul.bf16.gmra.mxu0 %v702
      %v867 = vpop.f32.mrf.mxu0
      %v868 = vadd.f32 0.0, %v867
      %v869 = vpop.f32.mrf.mxu0
      %v870 = vadd.f32 0.0, %v869
      %871 = vmatmul.bf16.gmra.mxu0 %v703
      %v872 = vpop.f32.mrf.mxu0
      %v873 = vadd.f32 0.0, %v872
      %v874 = vpop.f32.mrf.mxu0
      %v875 = vadd.f32 0.0, %v874
      %876 = vmatmul.bf16.gmra.mxu0 %v704
      %v877 = vpop.f32.mrf.mxu0
      %v878 = vadd.f32 0.0, %v877
      %v879 = vpop.f32.mrf.mxu0
      %v880 = vadd.f32 0.0, %v879
      %881 = vmatmul.bf16.gmra.mxu0 %v705
      %v882 = vpop.f32.mrf.mxu0
      %v883 = vadd.f32 0.0, %v882
      %v884 = vpop.f32.mrf.mxu0
      %v885 = vadd.f32 0.0, %v884
      %886 = vmatmul.bf16.gmra.mxu0 %v706
      %v887 = vpop.f32.mrf.mxu0
      %v888 = vadd.f32 0.0, %v887
      %v889 = vpop.f32.mrf.mxu0
      %v890 = vadd.f32 0.0, %v889
      %891 = vmatmul.bf16.gmra.mxu0 %v707
      %v892 = vpop.f32.mrf.mxu0
      %v893 = vadd.f32 0.0, %v892
      %v894 = vpop.f32.mrf.mxu0
      %v895 = vadd.f32 0.0, %v894
      %896 = vmatmul.bf16.gmra.mxu0 %v708
      %v897 = vpop.f32.mrf.mxu0
      %v898 = vadd.f32 0.0, %v897
      %v899 = vpop.f32.mrf.mxu0
      %v900 = vadd.f32 0.0, %v899
      %901 = vmatmul.bf16.gmra.mxu0 %v709
      %v902 = vpop.f32.mrf.mxu0
      %v903 = vadd.f32 0.0, %v902
      %v904 = vpop.f32.mrf.mxu0
      %v905 = vadd.f32 0.0, %v904
      %906 = vmatmul.bf16.gmra.mxu0 %v710
      %v907 = vpop.f32.mrf.mxu0
      %v908 = vadd.f32 0.0, %v907
      %v909 = vpop.f32.mrf.mxu0
      %v910 = vadd.f32 0.0, %v909
      %911 = vmatmul.bf16.gmra.mxu0 %v711
      %v912 = vpop.f32.mrf.mxu0
      %v913 = vadd.f32 0.0, %v912
      %v914 = vpop.f32.mrf.mxu0
      %v915 = vadd.f32 0.0, %v914
      %916 = vmatmul.bf16.gmra.mxu0 %v712
      %v917 = vpop.f32.mrf.mxu0
      %v918 = vadd.f32 0.0, %v917
      %v919 = vpop.f32.mrf.mxu0
      %v920 = vadd.f32 0.0, %v919
      %921 = vmatmul.bf16.gmra.mxu0 %v713
      %v922 = vpop.f32.mrf.mxu0
      %v923 = vadd.f32 0.0, %v922
      %v924 = vpop.f32.mrf.mxu0
      %v925 = vadd.f32 0.0, %v924
      %926 = vmatmul.bf16.gmra.mxu0 %v714
      %v927 = vpop.f32.mrf.mxu0
      %v928 = vadd.f32 0.0, %v927
      %v929 = vpop.f32.mrf.mxu0
      %v930 = vadd.f32 0.0, %v929
      %931 = vmatmul.bf16.gmra.mxu0 %v715
      %v932 = vpop.f32.mrf.mxu0
      %v933 = vadd.f32 0.0, %v932
      %v934 = vpop.f32.mrf.mxu0
      %v935 = vadd.f32 0.0, %v934
      %936 = vmatmul.bf16.gmra.mxu0 %v716
      %v937 = vpop.f32.mrf.mxu0
      %v938 = vadd.f32 0.0, %v937
      %v939 = vpop.f32.mrf.mxu0
      %v940 = vadd.f32 0.0, %v939
      %941 = vmatmul.bf16.gmra.mxu0 %v717
      %v942 = vpop.f32.mrf.mxu0
      %v943 = vadd.f32 0.0, %v942
      %v944 = vpop.f32.mrf.mxu0
      %v945 = vadd.f32 0.0, %v944
      %946 = vmatmul.bf16.gmra.mxu0 %v718
      %v947 = vpop.f32.mrf.mxu0
      %v948 = vadd.f32 0.0, %v947
      %v949 = vpop.f32.mrf.mxu0
      %v950 = vadd.f32 0.0, %v949
      %951 = vdwg.mxu0
      %v952 = vmax.f32 %v793, 0.0
      %v953 = vmax.f32 %v795, 0.0
      %v954 = vmax.f32 %v798, 0.0
      %v955 = vmax.f32 %v800, 0.0
      %v956 = vmax.f32 %v803, 0.0
      %v957 = vmax.f32 %v805, 0.0
      %v958 = vmax.f32 %v808, 0.0
      %v959 = vmax.f32 %v810, 0.0
      %v960 = vmax.f32 %v813, 0.0
      %v961 = vmax.f32 %v815, 0.0
      %v962 = vmax.f32 %v818, 0.0
      %v963 = vmax.f32 %v820, 0.0
      %v964 = vmax.f32 %v823, 0.0
      %v965 = vmax.f32 %v825, 0.0
      %v966 = vmax.f32 %v828, 0.0
      %v967 = vmax.f32 %v830, 0.0
      %v968 = vmax.f32 %v833, 0.0
      %v969 = vmax.f32 %v835, 0.0
      %v970 = vmax.f32 %v838, 0.0
      %v971 = vmax.f32 %v840, 0.0
      %v972 = vmax.f32 %v843, 0.0
      %v973 = vmax.f32 %v845, 0.0
      %v974 = vmax.f32 %v848, 0.0
      %v975 = vmax.f32 %v850, 0.0
      %v976 = vmax.f32 %v853, 0.0
      %v977 = vmax.f32 %v855, 0.0
      %v978 = vmax.f32 %v858, 0.0
      %v979 = vmax.f32 %v860, 0.0
      %v980 = vmax.f32 %v863, 0.0
      %v981 = vmax.f32 %v865, 0.0
      %v982 = vmax.f32 %v868, 0.0
      %v983 = vmax.f32 %v870, 0.0
      %v984 = vmax.f32 %v873, 0.0
      %v985 = vmax.f32 %v875, 0.0
      %v986 = vmax.f32 %v878, 0.0
      %v987 = vmax.f32 %v880, 0.0
      %v988 = vmax.f32 %v883, 0.0
      %v989 = vmax.f32 %v885, 0.0
      %v990 = vmax.f32 %v888, 0.0
      %v991 = vmax.f32 %v890, 0.0
      %v992 = vmax.f32 %v893, 0.0
      %v993 = vmax.f32 %v895, 0.0
      %v994 = vmax.f32 %v898, 0.0
      %v995 = vmax.f32 %v900, 0.0
      %v996 = vmax.f32 %v903, 0.0
      %v997 = vmax.f32 %v905, 0.0
      %v998 = vmax.f32 %v908, 0.0
      %v999 = vmax.f32 %v910, 0.0
      %v1000 = vmax.f32 %v913, 0.0
      %v1001 = vmax.f32 %v915, 0.0
      %v1002 = vmax.f32 %v918, 0.0
      %v1003 = vmax.f32 %v920, 0.0
      %v1004 = vmax.f32 %v923, 0.0
      %v1005 = vmax.f32 %v925, 0.0
      %v1006 = vmax.f32 %v928, 0.0
      %v1007 = vmax.f32 %v930, 0.0
      %v1008 = vmax.f32 %v933, 0.0
      %v1009 = vmax.f32 %v935, 0.0
      %v1010 = vmax.f32 %v938, 0.0
      %v1011 = vmax.f32 %v940, 0.0
      %v1012 = vmax.f32 %v943, 0.0
      %v1013 = vmax.f32 %v945, 0.0
      %v1014 = vmax.f32 %v948, 0.0
      %v1015 = vmax.f32 %v950, 0.0
      %v1016 = vpack.c.bf16 %v953, %v952
      %v1017 = vpack.c.bf16 %v955, %v954
      %v1018 = vpack.c.bf16 %v957, %v956
      %v1019 = vpack.c.bf16 %v959, %v958
      %v1020 = vpack.c.bf16 %v961, %v960
      %v1021 = vpack.c.bf16 %v963, %v962
      %v1022 = vpack.c.bf16 %v965, %v964
      %v1023 = vpack.c.bf16 %v967, %v966
      %v1024 = vpack.c.bf16 %v969, %v968
      %v1025 = vpack.c.bf16 %v971, %v970
      %v1026 = vpack.c.bf16 %v973, %v972
      %v1027 = vpack.c.bf16 %v975, %v974
      %v1028 = vpack.c.bf16 %v977, %v976
      %v1029 = vpack.c.bf16 %v979, %v978
      %v1030 = vpack.c.bf16 %v981, %v980
      %v1031 = vpack.c.bf16 %v983, %v982
      %v1032 = vpack.c.bf16 %v985, %v984
      %v1033 = vpack.c.bf16 %v987, %v986
      %v1034 = vpack.c.bf16 %v989, %v988
      %v1035 = vpack.c.bf16 %v991, %v990
      %v1036 = vpack.c.bf16 %v993, %v992
      %v1037 = vpack.c.bf16 %v995, %v994
      %v1038 = vpack.c.bf16 %v997, %v996
      %v1039 = vpack.c.bf16 %v999, %v998
      %v1040 = vpack.c.bf16 %v1001, %v1000
      %v1041 = vpack.c.bf16 %v1003, %v1002
      %v1042 = vpack.c.bf16 %v1005, %v1004
      %v1043 = vpack.c.bf16 %v1007, %v1006
      %v1044 = vpack.c.bf16 %v1009, %v1008
      %v1045 = vpack.c.bf16 %v1011, %v1010
      %v1046 = vpack.c.bf16 %v1013, %v1012
      %v1047 = vpack.c.bf16 %v1015, %v1014
      %v1048 = vld [vmem:[%s3] sm:$0xf]
      %v1049 = vld [vmem:[%s3 + $0x4] sm:$0xf]
      %v1050 = vld [vmem:[%s3 + $0x8] sm:$0xf]
      %v1051 = vld [vmem:[%s3 + $0xc] sm:$0xf]
      %v1052 = vld [vmem:[%s3 + $0x10] sm:$0xf]
      %v1053 = vld [vmem:[%s3 + $0x14] sm:$0xf]
      %v1054 = vld [vmem:[%s3 + $0x18] sm:$0xf]
      %v1055 = vld [vmem:[%s3 + $0x1c] sm:$0xf]
      %v1064 = vunpack.c.l.b16 %v1048
      %v1065 = vunpack.c.l.b16 %v1049
      %v1066 = vunpack.c.l.b16 %v1050
      %v1067 = vunpack.c.l.b16 %v1051
      %v1068 = vunpack.c.l.b16 %v1052
      %v1069 = vunpack.c.l.b16 %v1053
      %v1070 = vunpack.c.l.b16 %v1054
      %v1071 = vunpack.c.l.b16 %v1055
      %v1072 = vpack.c.b16 %v1065, %v1064
      %v1073 = vpack.c.b16 %v1067, %v1066
      %v1074 = vpack.c.b16 %v1069, %v1068
      %v1075 = vpack.c.b16 %v1071, %v1070
      %vm1080 = vcmask 523264
      %v1082 = vsel %vm1080, %v1016, 0
      %v1085 = vsel %vm1080, %v1017, 0
      %v1088 = vsel %vm1080, %v1018, 0
      %v1091 = vsel %vm1080, %v1019, 0
      %v1094 = vsel %vm1080, %v1020, 0
      %v1097 = vsel %vm1080, %v1021, 0
      %v1100 = vsel %vm1080, %v1022, 0
      %v1103 = vsel %vm1080, %v1023, 0
      %v1106 = vsel %vm1080, %v1024, 0
      %v1109 = vsel %vm1080, %v1025, 0
      %v1112 = vsel %vm1080, %v1026, 0
      %v1115 = vsel %vm1080, %v1027, 0
      %v1118 = vsel %vm1080, %v1028, 0
      %v1121 = vsel %vm1080, %v1029, 0
      %v1124 = vsel %vm1080, %v1030, 0
      %v1127 = vsel %vm1080, %v1031, 0
      %v1130 = vsel %vm1080, %v1032, 0
      %v1133 = vsel %vm1080, %v1033, 0
      %v1136 = vsel %vm1080, %v1034, 0
      %v1139 = vsel %vm1080, %v1035, 0
      %v1142 = vsel %vm1080, %v1036, 0
      %v1145 = vsel %vm1080, %v1037, 0
      %v1148 = vsel %vm1080, %v1038, 0
      %v1151 = vsel %vm1080, %v1039, 0
      %v1154 = vsel %vm1080, %v1040, 0
      %v1157 = vsel %vm1080, %v1041, 0
      %v1160 = vsel %vm1080, %v1042, 0
      %v1163 = vsel %vm1080, %v1043, 0
      %v1166 = vsel %vm1080, %v1044, 0
      %v1169 = vsel %vm1080, %v1045, 0
      %v1172 = vsel %vm1080, %v1046, 0
      %v1175 = vsel %vm1080, %v1047, 0
      %1177 = vmatpush.bf16.msra.mxu0 0
      %1178 = vmatpush.bf16.msra.mxu0 0
      %1179 = vmatpush.bf16.msra.mxu0 0
      %1180 = vmatpush.bf16.msra.mxu0 0
      %1181 = vmatpush.bf16.msra.mxu0 %v1075
      %1182 = vmatpush.bf16.msra.mxu0 %v1074
      %1183 = vmatpush.bf16.msra.mxu0 %v1073
      %1184 = vmatpush.bf16.msra.mxu0 %v1072
      %1185 = vmatmul.bf16.gmra.mxu0 %v1082
      %v1186 = vpop.f32.mrf.mxu0
      %v1187 = vadd.f32 0.0, %v1186
      %v1188 = vpop.f32.mrf.mxu0
      %v1189 = vadd.f32 0.0, %v1188
      %1190 = vmatmul.bf16.gmra.mxu0 %v1085
      %v1191 = vpop.f32.mrf.mxu0
      %v1192 = vadd.f32 0.0, %v1191
      %v1193 = vpop.f32.mrf.mxu0
      %v1194 = vadd.f32 0.0, %v1193
      %1195 = vmatmul.bf16.gmra.mxu0 %v1088
      %v1196 = vpop.f32.mrf.mxu0
      %v1197 = vadd.f32 0.0, %v1196
      %v1198 = vpop.f32.mrf.mxu0
      %v1199 = vadd.f32 0.0, %v1198
      %1200 = vmatmul.bf16.gmra.mxu0 %v1091
      %v1201 = vpop.f32.mrf.mxu0
      %v1202 = vadd.f32 0.0, %v1201
      %v1203 = vpop.f32.mrf.mxu0
      %v1204 = vadd.f32 0.0, %v1203
      %1205 = vmatmul.bf16.gmra.mxu0 %v1094
      %v1206 = vpop.f32.mrf.mxu0
      %v1207 = vadd.f32 0.0, %v1206
      %v1208 = vpop.f32.mrf.mxu0
      %v1209 = vadd.f32 0.0, %v1208
      %1210 = vmatmul.bf16.gmra.mxu0 %v1097
      %v1211 = vpop.f32.mrf.mxu0
      %v1212 = vadd.f32 0.0, %v1211
      %v1213 = vpop.f32.mrf.mxu0
      %v1214 = vadd.f32 0.0, %v1213
      %1215 = vmatmul.bf16.gmra.mxu0 %v1100
      %v1216 = vpop.f32.mrf.mxu0
      %v1217 = vadd.f32 0.0, %v1216
      %v1218 = vpop.f32.mrf.mxu0
      %v1219 = vadd.f32 0.0, %v1218
      %1220 = vmatmul.bf16.gmra.mxu0 %v1103
      %v1221 = vpop.f32.mrf.mxu0
      %v1222 = vadd.f32 0.0, %v1221
      %v1223 = vpop.f32.mrf.mxu0
      %v1224 = vadd.f32 0.0, %v1223
      %1225 = vmatmul.bf16.gmra.mxu0 %v1106
      %v1226 = vpop.f32.mrf.mxu0
      %v1227 = vadd.f32 0.0, %v1226
      %v1228 = vpop.f32.mrf.mxu0
      %v1229 = vadd.f32 0.0, %v1228
      %1230 = vmatmul.bf16.gmra.mxu0 %v1109
      %v1231 = vpop.f32.mrf.mxu0
      %v1232 = vadd.f32 0.0, %v1231
      %v1233 = vpop.f32.mrf.mxu0
      %v1234 = vadd.f32 0.0, %v1233
      %1235 = vmatmul.bf16.gmra.mxu0 %v1112
      %v1236 = vpop.f32.mrf.mxu0
      %v1237 = vadd.f32 0.0, %v1236
      %v1238 = vpop.f32.mrf.mxu0
      %v1239 = vadd.f32 0.0, %v1238
      %1240 = vmatmul.bf16.gmra.mxu0 %v1115
      %v1241 = vpop.f32.mrf.mxu0
      %v1242 = vadd.f32 0.0, %v1241
      %v1243 = vpop.f32.mrf.mxu0
      %v1244 = vadd.f32 0.0, %v1243
      %1245 = vmatmul.bf16.gmra.mxu0 %v1118
      %v1246 = vpop.f32.mrf.mxu0
      %v1247 = vadd.f32 0.0, %v1246
      %v1248 = vpop.f32.mrf.mxu0
      %v1249 = vadd.f32 0.0, %v1248
      %1250 = vmatmul.bf16.gmra.mxu0 %v1121
      %v1251 = vpop.f32.mrf.mxu0
      %v1252 = vadd.f32 0.0, %v1251
      %v1253 = vpop.f32.mrf.mxu0
      %v1254 = vadd.f32 0.0, %v1253
      %1255 = vmatmul.bf16.gmra.mxu0 %v1124
      %v1256 = vpop.f32.mrf.mxu0
      %v1257 = vadd.f32 0.0, %v1256
      %v1258 = vpop.f32.mrf.mxu0
      %v1259 = vadd.f32 0.0, %v1258
      %1260 = vmatmul.bf16.gmra.mxu0 %v1127
      %v1261 = vpop.f32.mrf.mxu0
      %v1262 = vadd.f32 0.0, %v1261
      %v1263 = vpop.f32.mrf.mxu0
      %v1264 = vadd.f32 0.0, %v1263
      %1265 = vmatmul.bf16.gmra.mxu0 %v1130
      %v1266 = vpop.f32.mrf.mxu0
      %v1267 = vadd.f32 0.0, %v1266
      %v1268 = vpop.f32.mrf.mxu0
      %v1269 = vadd.f32 0.0, %v1268
      %1270 = vmatmul.bf16.gmra.mxu0 %v1133
      %v1271 = vpop.f32.mrf.mxu0
      %v1272 = vadd.f32 0.0, %v1271
      %v1273 = vpop.f32.mrf.mxu0
      %v1274 = vadd.f32 0.0, %v1273
      %1275 = vmatmul.bf16.gmra.mxu0 %v1136
      %v1276 = vpop.f32.mrf.mxu0
      %v1277 = vadd.f32 0.0, %v1276
      %v1278 = vpop.f32.mrf.mxu0
      %v1279 = vadd.f32 0.0, %v1278
      %1280 = vmatmul.bf16.gmra.mxu0 %v1139
      %v1281 = vpop.f32.mrf.mxu0
      %v1282 = vadd.f32 0.0, %v1281
      %v1283 = vpop.f32.mrf.mxu0
      %v1284 = vadd.f32 0.0, %v1283
      %1285 = vmatmul.bf16.gmra.mxu0 %v1142
      %v1286 = vpop.f32.mrf.mxu0
      %v1287 = vadd.f32 0.0, %v1286
      %v1288 = vpop.f32.mrf.mxu0
      %v1289 = vadd.f32 0.0, %v1288
      %1290 = vmatmul.bf16.gmra.mxu0 %v1145
      %v1291 = vpop.f32.mrf.mxu0
      %v1292 = vadd.f32 0.0, %v1291
      %v1293 = vpop.f32.mrf.mxu0
      %v1294 = vadd.f32 0.0, %v1293
      %1295 = vmatmul.bf16.gmra.mxu0 %v1148
      %v1296 = vpop.f32.mrf.mxu0
      %v1297 = vadd.f32 0.0, %v1296
      %v1298 = vpop.f32.mrf.mxu0
      %v1299 = vadd.f32 0.0, %v1298
      %1300 = vmatmul.bf16.gmra.mxu0 %v1151
      %v1301 = vpop.f32.mrf.mxu0
      %v1302 = vadd.f32 0.0, %v1301
      %v1303 = vpop.f32.mrf.mxu0
      %v1304 = vadd.f32 0.0, %v1303
      %1305 = vmatmul.bf16.gmra.mxu0 %v1154
      %v1306 = vpop.f32.mrf.mxu0
      %v1307 = vadd.f32 0.0, %v1306
      %v1308 = vpop.f32.mrf.mxu0
      %v1309 = vadd.f32 0.0, %v1308
      %1310 = vmatmul.bf16.gmra.mxu0 %v1157
      %v1311 = vpop.f32.mrf.mxu0
      %v1312 = vadd.f32 0.0, %v1311
      %v1313 = vpop.f32.mrf.mxu0
      %v1314 = vadd.f32 0.0, %v1313
      %1315 = vmatmul.bf16.gmra.mxu0 %v1160
      %v1316 = vpop.f32.mrf.mxu0
      %v1317 = vadd.f32 0.0, %v1316
      %v1318 = vpop.f32.mrf.mxu0
      %v1319 = vadd.f32 0.0, %v1318
      %1320 = vmatmul.bf16.gmra.mxu0 %v1163
      %v1321 = vpop.f32.mrf.mxu0
      %v1322 = vadd.f32 0.0, %v1321
      %v1323 = vpop.f32.mrf.mxu0
      %v1324 = vadd.f32 0.0, %v1323
      %1325 = vmatmul.bf16.gmra.mxu0 %v1166
      %v1326 = vpop.f32.mrf.mxu0
      %v1327 = vadd.f32 0.0, %v1326
      %v1328 = vpop.f32.mrf.mxu0
      %v1329 = vadd.f32 0.0, %v1328
      %1330 = vmatmul.bf16.gmra.mxu0 %v1169
      %v1331 = vpop.f32.mrf.mxu0
      %v1332 = vadd.f32 0.0, %v1331
      %v1333 = vpop.f32.mrf.mxu0
      %v1334 = vadd.f32 0.0, %v1333
      %1335 = vmatmul.bf16.gmra.mxu0 %v1172
      %v1336 = vpop.f32.mrf.mxu0
      %v1337 = vadd.f32 0.0, %v1336
      %v1338 = vpop.f32.mrf.mxu0
      %v1339 = vadd.f32 0.0, %v1338
      %1340 = vmatmul.bf16.gmra.mxu0 %v1175
      %v1341 = vpop.f32.mrf.mxu0
      %v1342 = vadd.f32 0.0, %v1341
      %v1343 = vpop.f32.mrf.mxu0
      %v1344 = vadd.f32 0.0, %v1343
      %1345 = vdwg.mxu0
      %v1346 = vpack.c.bf16 %v1189, %v1187
      %v1347 = vpack.c.bf16 %v1194, %v1192
      %v1348 = vpack.c.bf16 %v1199, %v1197
      %v1349 = vpack.c.bf16 %v1204, %v1202
      %v1350 = vpack.c.bf16 %v1209, %v1207
      %v1351 = vpack.c.bf16 %v1214, %v1212
      %v1352 = vpack.c.bf16 %v1219, %v1217
      %v1353 = vpack.c.bf16 %v1224, %v1222
      %v1354 = vpack.c.bf16 %v1229, %v1227
      %v1355 = vpack.c.bf16 %v1234, %v1232
      %v1356 = vpack.c.bf16 %v1239, %v1237
      %v1357 = vpack.c.bf16 %v1244, %v1242
      %v1358 = vpack.c.bf16 %v1249, %v1247
      %v1359 = vpack.c.bf16 %v1254, %v1252
      %v1360 = vpack.c.bf16 %v1259, %v1257
      %v1361 = vpack.c.bf16 %v1264, %v1262
      %v1362 = vpack.c.bf16 %v1269, %v1267
      %v1363 = vpack.c.bf16 %v1274, %v1272
      %v1364 = vpack.c.bf16 %v1279, %v1277
      %v1365 = vpack.c.bf16 %v1284, %v1282
      %v1366 = vpack.c.bf16 %v1289, %v1287
      %v1367 = vpack.c.bf16 %v1294, %v1292
      %v1368 = vpack.c.bf16 %v1299, %v1297
      %v1369 = vpack.c.bf16 %v1304, %v1302
      %v1370 = vpack.c.bf16 %v1309, %v1307
      %v1371 = vpack.c.bf16 %v1314, %v1312
      %v1372 = vpack.c.bf16 %v1319, %v1317
      %v1373 = vpack.c.bf16 %v1324, %v1322
      %v1374 = vpack.c.bf16 %v1329, %v1327
      %v1375 = vpack.c.bf16 %v1334, %v1332
      %v1376 = vpack.c.bf16 %v1339, %v1337
      %v1377 = vpack.c.bf16 %v1344, %v1342
      %v1378 = vld [vmem:[%s4] sm:$0xf]
      %v1379 = vld [vmem:[%s4 + $0x4] sm:$0xf]
      %v1380 = vld [vmem:[%s4 + $0x8] sm:$0xf]
      %v1381 = vld [vmem:[%s4 + $0xc] sm:$0xf]
      %v1382 = vld [vmem:[%s4 + $0x10] sm:$0xf]
      %v1383 = vld [vmem:[%s4 + $0x14] sm:$0xf]
      %v1384 = vld [vmem:[%s4 + $0x18] sm:$0xf]
      %v1385 = vld [vmem:[%s4 + $0x1c] sm:$0xf]
      %v1386 = vld [vmem:[%s4 + $0x20] sm:$0xf]
      %v1387 = vld [vmem:[%s4 + $0x24] sm:$0xf]
      %v1388 = vld [vmem:[%s4 + $0x28] sm:$0xf]
      %v1389 = vld [vmem:[%s4 + $0x2c] sm:$0xf]
      %v1390 = vld [vmem:[%s4 + $0x30] sm:$0xf]
      %v1391 = vld [vmem:[%s4 + $0x34] sm:$0xf]
      %v1392 = vld [vmem:[%s4 + $0x38] sm:$0xf]
      %v1393 = vld [vmem:[%s4 + $0x3c] sm:$0xf]
      %v1410 = vunpack.c.l.b16 %v1378
      %v1411 = vunpack.c.l.b16 %v1379
      %v1412 = vunpack.c.l.b16 %v1380
      %v1413 = vunpack.c.l.b16 %v1381
      %v1414 = vunpack.c.l.b16 %v1382
      %v1415 = vunpack.c.l.b16 %v1383
      %v1416 = vunpack.c.l.b16 %v1384
      %v1417 = vunpack.c.l.b16 %v1385
      %v1418 = vunpack.c.l.b16 %v1386
      %v1419 = vunpack.c.l.b16 %v1387
      %v1420 = vunpack.c.l.b16 %v1388
      %v1421 = vunpack.c.l.b16 %v1389
      %v1422 = vunpack.c.l.b16 %v1390
      %v1423 = vunpack.c.l.b16 %v1391
      %v1424 = vunpack.c.l.b16 %v1392
      %v1425 = vunpack.c.l.b16 %v1393
      %v1426 = vpack.c.b16 %v1411, %v1410
      %v1427 = vpack.c.b16 %v1413, %v1412
      %v1428 = vpack.c.b16 %v1415, %v1414
      %v1429 = vpack.c.b16 %v1417, %v1416
      %v1430 = vpack.c.b16 %v1419, %v1418
      %v1431 = vpack.c.b16 %v1421, %v1420
      %v1432 = vpack.c.b16 %v1423, %v1422
      %v1433 = vpack.c.b16 %v1425, %v1424
      %1442 = vmatpush.bf16.msra.mxu0 %v1433
      %1443 = vmatpush.bf16.msra.mxu0 %v1432
      %1444 = vmatpush.bf16.msra.mxu0 %v1431
      %1445 = vmatpush.bf16.msra.mxu0 %v1430
      %1446 = vmatpush.bf16.msra.mxu0 %v1429
      %1447 = vmatpush.bf16.msra.mxu0 %v1428
      %1448 = vmatpush.bf16.msra.mxu0 %v1427
      %1449 = vmatpush.bf16.msra.mxu0 %v1426
      %1450 = vmatmul.bf16.gmra.mxu0 %v1346
      %v1451 = vpop.f32.mrf.mxu0
      %v1452 = vadd.f32 %v464, %v1451
      %v1453 = vpop.f32.mrf.mxu0
      %v1454 = vadd.f32 %v466, %v1453
      %1455 = vmatmul.bf16.gmra.mxu0 %v1347
      %v1456 = vpop.f32.mrf.mxu0
      %v1457 = vadd.f32 %v469, %v1456
      %v1458 = vpop.f32.mrf.mxu0
      %v1459 = vadd.f32 %v471, %v1458
      %1460 = vmatmul.bf16.gmra.mxu0 %v1348
      %v1461 = vpop.f32.mrf.mxu0
      %v1462 = vadd.f32 %v474, %v1461
      %v1463 = vpop.f32.mrf.mxu0
      %v1464 = vadd.f32 %v476, %v1463
      %1465 = vmatmul.bf16.gmra.mxu0 %v1349
      %v1466 = vpop.f32.mrf.mxu0
      %v1467 = vadd.f32 %v479, %v1466
      %v1468 = vpop.f32.mrf.mxu0
      %v1469 = vadd.f32 %v481, %v1468
      %1470 = vmatmul.bf16.gmra.mxu0 %v1350
      %v1471 = vpop.f32.mrf.mxu0
      %v1472 = vadd.f32 %v484, %v1471
      %v1473 = vpop.f32.mrf.mxu0
      %v1474 = vadd.f32 %v486, %v1473
      %1475 = vmatmul.bf16.gmra.mxu0 %v1351
      %v1476 = vpop.f32.mrf.mxu0
      %v1477 = vadd.f32 %v489, %v1476
      %v1478 = vpop.f32.mrf.mxu0
      %v1479 = vadd.f32 %v491, %v1478
      %1480 = vmatmul.bf16.gmra.mxu0 %v1352
      %v1481 = vpop.f32.mrf.mxu0
      %v1482 = vadd.f32 %v494, %v1481
      %v1483 = vpop.f32.mrf.mxu0
      %v1484 = vadd.f32 %v496, %v1483
      %1485 = vmatmul.bf16.gmra.mxu0 %v1353
      %v1486 = vpop.f32.mrf.mxu0
      %v1487 = vadd.f32 %v499, %v1486
      %v1488 = vpop.f32.mrf.mxu0
      %v1489 = vadd.f32 %v501, %v1488
      %1490 = vmatmul.bf16.gmra.mxu0 %v1354
      %v1491 = vpop.f32.mrf.mxu0
      %v1492 = vadd.f32 %v504, %v1491
      %v1493 = vpop.f32.mrf.mxu0
      %v1494 = vadd.f32 %v506, %v1493
      %1495 = vmatmul.bf16.gmra.mxu0 %v1355
      %v1496 = vpop.f32.mrf.mxu0
      %v1497 = vadd.f32 %v509, %v1496
      %v1498 = vpop.f32.mrf.mxu0
      %v1499 = vadd.f32 %v511, %v1498
      %1500 = vmatmul.bf16.gmra.mxu0 %v1356
      %v1501 = vpop.f32.mrf.mxu0
      %v1502 = vadd.f32 %v514, %v1501
      %v1503 = vpop.f32.mrf.mxu0
      %v1504 = vadd.f32 %v516, %v1503
      %1505 = vmatmul.bf16.gmra.mxu0 %v1357
      %v1506 = vpop.f32.mrf.mxu0
      %v1507 = vadd.f32 %v519, %v1506
      %v1508 = vpop.f32.mrf.mxu0
      %v1509 = vadd.f32 %v521, %v1508
      %1510 = vmatmul.bf16.gmra.mxu0 %v1358
      %v1511 = vpop.f32.mrf.mxu0
      %v1512 = vadd.f32 %v524, %v1511
      %v1513 = vpop.f32.mrf.mxu0
      %v1514 = vadd.f32 %v526, %v1513
      %1515 = vmatmul.bf16.gmra.mxu0 %v1359
      %v1516 = vpop.f32.mrf.mxu0
      %v1517 = vadd.f32 %v529, %v1516
      %v1518 = vpop.f32.mrf.mxu0
      %v1519 = vadd.f32 %v531, %v1518
      %1520 = vmatmul.bf16.gmra.mxu0 %v1360
      %v1521 = vpop.f32.mrf.mxu0
      %v1522 = vadd.f32 %v534, %v1521
      %v1523 = vpop.f32.mrf.mxu0
      %v1524 = vadd.f32 %v536, %v1523
      %1525 = vmatmul.bf16.gmra.mxu0 %v1361
      %v1526 = vpop.f32.mrf.mxu0
      %v1527 = vadd.f32 %v539, %v1526
      %v1528 = vpop.f32.mrf.mxu0
      %v1529 = vadd.f32 %v541, %v1528
      %1530 = vmatmul.bf16.gmra.mxu0 %v1362
      %v1531 = vpop.f32.mrf.mxu0
      %v1532 = vadd.f32 %v544, %v1531
      %v1533 = vpop.f32.mrf.mxu0
      %v1534 = vadd.f32 %v546, %v1533
      %1535 = vmatmul.bf16.gmra.mxu0 %v1363
      %v1536 = vpop.f32.mrf.mxu0
      %v1537 = vadd.f32 %v549, %v1536
      %v1538 = vpop.f32.mrf.mxu0
      %v1539 = vadd.f32 %v551, %v1538
      %1540 = vmatmul.bf16.gmra.mxu0 %v1364
      %v1541 = vpop.f32.mrf.mxu0
      %v1542 = vadd.f32 %v554, %v1541
      %v1543 = vpop.f32.mrf.mxu0
      %v1544 = vadd.f32 %v556, %v1543
      %1545 = vmatmul.bf16.gmra.mxu0 %v1365
      %v1546 = vpop.f32.mrf.mxu0
      %v1547 = vadd.f32 %v559, %v1546
      %v1548 = vpop.f32.mrf.mxu0
      %v1549 = vadd.f32 %v561, %v1548
      %1550 = vmatmul.bf16.gmra.mxu0 %v1366
      %v1551 = vpop.f32.mrf.mxu0
      %v1552 = vadd.f32 %v564, %v1551
      %v1553 = vpop.f32.mrf.mxu0
      %v1554 = vadd.f32 %v566, %v1553
      %1555 = vmatmul.bf16.gmra.mxu0 %v1367
      %v1556 = vpop.f32.mrf.mxu0
      %v1557 = vadd.f32 %v569, %v1556
      %v1558 = vpop.f32.mrf.mxu0
      %v1559 = vadd.f32 %v571, %v1558
      %1560 = vmatmul.bf16.gmra.mxu0 %v1368
      %v1561 = vpop.f32.mrf.mxu0
      %v1562 = vadd.f32 %v574, %v1561
      %v1563 = vpop.f32.mrf.mxu0
      %v1564 = vadd.f32 %v576, %v1563
      %1565 = vmatmul.bf16.gmra.mxu0 %v1369
      %v1566 = vpop.f32.mrf.mxu0
      %v1567 = vadd.f32 %v579, %v1566
      %v1568 = vpop.f32.mrf.mxu0
      %v1569 = vadd.f32 %v581, %v1568
      %1570 = vmatmul.bf16.gmra.mxu0 %v1370
      %v1571 = vpop.f32.mrf.mxu0
      %v1572 = vadd.f32 %v584, %v1571
      %v1573 = vpop.f32.mrf.mxu0
      %v1574 = vadd.f32 %v586, %v1573
      %1575 = vmatmul.bf16.gmra.mxu0 %v1371
      %v1576 = vpop.f32.mrf.mxu0
      %v1577 = vadd.f32 %v589, %v1576
      %v1578 = vpop.f32.mrf.mxu0
      %v1579 = vadd.f32 %v591, %v1578
      %1580 = vmatmul.bf16.gmra.mxu0 %v1372
      %v1581 = vpop.f32.mrf.mxu0
      %v1582 = vadd.f32 %v594, %v1581
      %v1583 = vpop.f32.mrf.mxu0
      %v1584 = vadd.f32 %v596, %v1583
      %1585 = vmatmul.bf16.gmra.mxu0 %v1373
      %v1586 = vpop.f32.mrf.mxu0
      %v1587 = vadd.f32 %v599, %v1586
      %v1588 = vpop.f32.mrf.mxu0
      %v1589 = vadd.f32 %v601, %v1588
      %1590 = vmatmul.bf16.gmra.mxu0 %v1374
      %v1591 = vpop.f32.mrf.mxu0
      %v1592 = vadd.f32 %v604, %v1591
      %v1593 = vpop.f32.mrf.mxu0
      %v1594 = vadd.f32 %v606, %v1593
      %1595 = vmatmul.bf16.gmra.mxu0 %v1375
      %v1596 = vpop.f32.mrf.mxu0
      %v1597 = vadd.f32 %v609, %v1596
      %v1598 = vpop.f32.mrf.mxu0
      %v1599 = vadd.f32 %v611, %v1598
      %1600 = vmatmul.bf16.gmra.mxu0 %v1376
      %v1601 = vpop.f32.mrf.mxu0
      %v1602 = vadd.f32 %v614, %v1601
      %v1603 = vpop.f32.mrf.mxu0
      %v1604 = vadd.f32 %v616, %v1603
      %1605 = vmatmul.bf16.gmra.mxu0 %v1377
      %v1606 = vpop.f32.mrf.mxu0
      %v1607 = vadd.f32 %v619, %v1606
      %v1608 = vpop.f32.mrf.mxu0
      %v1609 = vadd.f32 %v621, %v1608
      %1610 = vdwg.mxu0
      %v1611 = vmax.f32 %v1452, 0.0
      %v1612 = vmax.f32 %v1454, 0.0
      %v1613 = vmax.f32 %v1457, 0.0
      %v1614 = vmax.f32 %v1459, 0.0
      %v1615 = vmax.f32 %v1462, 0.0
      %v1616 = vmax.f32 %v1464, 0.0
      %v1617 = vmax.f32 %v1467, 0.0
      %v1618 = vmax.f32 %v1469, 0.0
      %v1619 = vmax.f32 %v1472, 0.0
      %v1620 = vmax.f32 %v1474, 0.0
      %v1621 = vmax.f32 %v1477, 0.0
      %v1622 = vmax.f32 %v1479, 0.0
      %v1623 = vmax.f32 %v1482, 0.0
      %v1624 = vmax.f32 %v1484, 0.0
      %v1625 = vmax.f32 %v1487, 0.0
      %v1626 = vmax.f32 %v1489, 0.0
      %v1627 = vmax.f32 %v1492, 0.0
      %v1628 = vmax.f32 %v1494, 0.0
      %v1629 = vmax.f32 %v1497, 0.0
      %v1630 = vmax.f32 %v1499, 0.0
      %v1631 = vmax.f32 %v1502, 0.0
      %v1632 = vmax.f32 %v1504, 0.0
      %v1633 = vmax.f32 %v1507, 0.0
      %v1634 = vmax.f32 %v1509, 0.0
      %v1635 = vmax.f32 %v1512, 0.0
      %v1636 = vmax.f32 %v1514, 0.0
      %v1637 = vmax.f32 %v1517, 0.0
      %v1638 = vmax.f32 %v1519, 0.0
      %v1639 = vmax.f32 %v1522, 0.0
      %v1640 = vmax.f32 %v1524, 0.0
      %v1641 = vmax.f32 %v1527, 0.0
      %v1642 = vmax.f32 %v1529, 0.0
      %v1643 = vmax.f32 %v1532, 0.0
      %v1644 = vmax.f32 %v1534, 0.0
      %v1645 = vmax.f32 %v1537, 0.0
      %v1646 = vmax.f32 %v1539, 0.0
      %v1647 = vmax.f32 %v1542, 0.0
      %v1648 = vmax.f32 %v1544, 0.0
      %v1649 = vmax.f32 %v1547, 0.0
      %v1650 = vmax.f32 %v1549, 0.0
      %v1651 = vmax.f32 %v1552, 0.0
      %v1652 = vmax.f32 %v1554, 0.0
      %v1653 = vmax.f32 %v1557, 0.0
      %v1654 = vmax.f32 %v1559, 0.0
      %v1655 = vmax.f32 %v1562, 0.0
      %v1656 = vmax.f32 %v1564, 0.0
      %v1657 = vmax.f32 %v1567, 0.0
      %v1658 = vmax.f32 %v1569, 0.0
      %v1659 = vmax.f32 %v1572, 0.0
      %v1660 = vmax.f32 %v1574, 0.0
      %v1661 = vmax.f32 %v1577, 0.0
      %v1662 = vmax.f32 %v1579, 0.0
      %v1663 = vmax.f32 %v1582, 0.0
      %v1664 = vmax.f32 %v1584, 0.0
      %v1665 = vmax.f32 %v1587, 0.0
      %v1666 = vmax.f32 %v1589, 0.0
      %v1667 = vmax.f32 %v1592, 0.0
      %v1668 = vmax.f32 %v1594, 0.0
      %v1669 = vmax.f32 %v1597, 0.0
      %v1670 = vmax.f32 %v1599, 0.0
      %v1671 = vmax.f32 %v1602, 0.0
      %v1672 = vmax.f32 %v1604, 0.0
      %v1673 = vmax.f32 %v1607, 0.0
      %v1674 = vmax.f32 %v1609, 0.0
      %v1675 = vpack.c.bf16 %v1612, %v1611
      %v1676 = vpack.c.bf16 %v1614, %v1613
      %v1677 = vpack.c.bf16 %v1616, %v1615
      %v1678 = vpack.c.bf16 %v1618, %v1617
      %v1679 = vpack.c.bf16 %v1620, %v1619
      %v1680 = vpack.c.bf16 %v1622, %v1621
      %v1681 = vpack.c.bf16 %v1624, %v1623
      %v1682 = vpack.c.bf16 %v1626, %v1625
      %v1683 = vpack.c.bf16 %v1628, %v1627
      %v1684 = vpack.c.bf16 %v1630, %v1629
      %v1685 = vpack.c.bf16 %v1632, %v1631
      %v1686 = vpack.c.bf16 %v1634, %v1633
      %v1687 = vpack.c.bf16 %v1636, %v1635
      %v1688 = vpack.c.bf16 %v1638, %v1637
      %v1689 = vpack.c.bf16 %v1640, %v1639
      %v1690 = vpack.c.bf16 %v1642, %v1641
      %v1691 = vpack.c.bf16 %v1644, %v1643
      %v1692 = vpack.c.bf16 %v1646, %v1645
      %v1693 = vpack.c.bf16 %v1648, %v1647
      %v1694 = vpack.c.bf16 %v1650, %v1649
      %v1695 = vpack.c.bf16 %v1652, %v1651
      %v1696 = vpack.c.bf16 %v1654, %v1653
      %v1697 = vpack.c.bf16 %v1656, %v1655
      %v1698 = vpack.c.bf16 %v1658, %v1657
      %v1699 = vpack.c.bf16 %v1660, %v1659
      %v1700 = vpack.c.bf16 %v1662, %v1661
      %v1701 = vpack.c.bf16 %v1664, %v1663
      %v1702 = vpack.c.bf16 %v1666, %v1665
      %v1703 = vpack.c.bf16 %v1668, %v1667
      %v1704 = vpack.c.bf16 %v1670, %v1669
      %v1705 = vpack.c.bf16 %v1672, %v1671
      %v1706 = vpack.c.bf16 %v1674, %v1673
      %s1707 = scalar_lea.vmem %s2, 64
      %v1708 = vld [vmem:[%s1707] sm:$0xf]
      %v1709 = vld [vmem:[%s1707 + $0x4] sm:$0xf]
      %v1710 = vld [vmem:[%s1707 + $0x8] sm:$0xf]
      %v1711 = vld [vmem:[%s1707 + $0xc] sm:$0xf]
      %v1712 = vld [vmem:[%s1707 + $0x10] sm:$0xf]
      %v1713 = vld [vmem:[%s1707 + $0x14] sm:$0xf]
      %v1714 = vld [vmem:[%s1707 + $0x18] sm:$0xf]
      %v1715 = vld [vmem:[%s1707 + $0x1c] sm:$0xf]
      %v1716 = vld [vmem:[%s1707 + $0x20] sm:$0xf]
      %v1717 = vld [vmem:[%s1707 + $0x24] sm:$0xf]
      %v1718 = vld [vmem:[%s1707 + $0x28] sm:$0xf]
      %v1719 = vld [vmem:[%s1707 + $0x2c] sm:$0xf]
      %v1720 = vld [vmem:[%s1707 + $0x30] sm:$0xf]
      %v1721 = vld [vmem:[%s1707 + $0x34] sm:$0xf]
      %v1722 = vld [vmem:[%s1707 + $0x38] sm:$0xf]
      %v1723 = vld [vmem:[%s1707 + $0x3c] sm:$0xf]
      %v1740 = vunpack.c.l.b16 %v1708
      %v1741 = vunpack.c.l.b16 %v1709
      %v1742 = vunpack.c.l.b16 %v1710
      %v1743 = vunpack.c.l.b16 %v1711
      %v1744 = vunpack.c.l.b16 %v1712
      %v1745 = vunpack.c.l.b16 %v1713
      %v1746 = vunpack.c.l.b16 %v1714
      %v1747 = vunpack.c.l.b16 %v1715
      %v1748 = vunpack.c.l.b16 %v1716
      %v1749 = vunpack.c.l.b16 %v1717
      %v1750 = vunpack.c.l.b16 %v1718
      %v1751 = vunpack.c.l.b16 %v1719
      %v1752 = vunpack.c.l.b16 %v1720
      %v1753 = vunpack.c.l.b16 %v1721
      %v1754 = vunpack.c.l.b16 %v1722
      %v1755 = vunpack.c.l.b16 %v1723
      %v1756 = vpack.c.b16 %v1741, %v1740
      %v1757 = vpack.c.b16 %v1743, %v1742
      %v1758 = vpack.c.b16 %v1745, %v1744
      %v1759 = vpack.c.b16 %v1747, %v1746
      %v1760 = vpack.c.b16 %v1749, %v1748
      %v1761 = vpack.c.b16 %v1751, %v1750
      %v1762 = vpack.c.b16 %v1753, %v1752
      %v1763 = vpack.c.b16 %v1755, %v1754
      %1772 = vmatpush.bf16.msra.mxu0 %v1763
      %1773 = vmatpush.bf16.msra.mxu0 %v1762
      %1774 = vmatpush.bf16.msra.mxu0 %v1761
      %1775 = vmatpush.bf16.msra.mxu0 %v1760
      %1776 = vmatpush.bf16.msra.mxu0 %v1759
      %1777 = vmatpush.bf16.msra.mxu0 %v1758
      %1778 = vmatpush.bf16.msra.mxu0 %v1757
      %1779 = vmatpush.bf16.msra.mxu0 %v1756
      %1780 = vmatmul.bf16.gmra.mxu0 %v1675
      %v1781 = vpop.f32.mrf.mxu0
      %v1782 = vadd.f32 0.0, %v1781
      %v1783 = vpop.f32.mrf.mxu0
      %v1784 = vadd.f32 0.0, %v1783
      %1785 = vmatmul.bf16.gmra.mxu0 %v1676
      %v1786 = vpop.f32.mrf.mxu0
      %v1787 = vadd.f32 0.0, %v1786
      %v1788 = vpop.f32.mrf.mxu0
      %v1789 = vadd.f32 0.0, %v1788
      %1790 = vmatmul.bf16.gmra.mxu0 %v1677
      %v1791 = vpop.f32.mrf.mxu0
      %v1792 = vadd.f32 0.0, %v1791
      %v1793 = vpop.f32.mrf.mxu0
      %v1794 = vadd.f32 0.0, %v1793
      %1795 = vmatmul.bf16.gmra.mxu0 %v1678
      %v1796 = vpop.f32.mrf.mxu0
      %v1797 = vadd.f32 0.0, %v1796
      %v1798 = vpop.f32.mrf.mxu0
      %v1799 = vadd.f32 0.0, %v1798
      %1800 = vmatmul.bf16.gmra.mxu0 %v1679
      %v1801 = vpop.f32.mrf.mxu0
      %v1802 = vadd.f32 0.0, %v1801
      %v1803 = vpop.f32.mrf.mxu0
      %v1804 = vadd.f32 0.0, %v1803
      %1805 = vmatmul.bf16.gmra.mxu0 %v1680
      %v1806 = vpop.f32.mrf.mxu0
      %v1807 = vadd.f32 0.0, %v1806
      %v1808 = vpop.f32.mrf.mxu0
      %v1809 = vadd.f32 0.0, %v1808
      %1810 = vmatmul.bf16.gmra.mxu0 %v1681
      %v1811 = vpop.f32.mrf.mxu0
      %v1812 = vadd.f32 0.0, %v1811
      %v1813 = vpop.f32.mrf.mxu0
      %v1814 = vadd.f32 0.0, %v1813
      %1815 = vmatmul.bf16.gmra.mxu0 %v1682
      %v1816 = vpop.f32.mrf.mxu0
      %v1817 = vadd.f32 0.0, %v1816
      %v1818 = vpop.f32.mrf.mxu0
      %v1819 = vadd.f32 0.0, %v1818
      %1820 = vmatmul.bf16.gmra.mxu0 %v1683
      %v1821 = vpop.f32.mrf.mxu0
      %v1822 = vadd.f32 0.0, %v1821
      %v1823 = vpop.f32.mrf.mxu0
      %v1824 = vadd.f32 0.0, %v1823
      %1825 = vmatmul.bf16.gmra.mxu0 %v1684
      %v1826 = vpop.f32.mrf.mxu0
      %v1827 = vadd.f32 0.0, %v1826
      %v1828 = vpop.f32.mrf.mxu0
      %v1829 = vadd.f32 0.0, %v1828
      %1830 = vmatmul.bf16.gmra.mxu0 %v1685
      %v1831 = vpop.f32.mrf.mxu0
      %v1832 = vadd.f32 0.0, %v1831
      %v1833 = vpop.f32.mrf.mxu0
      %v1834 = vadd.f32 0.0, %v1833
      %1835 = vmatmul.bf16.gmra.mxu0 %v1686
      %v1836 = vpop.f32.mrf.mxu0
      %v1837 = vadd.f32 0.0, %v1836
      %v1838 = vpop.f32.mrf.mxu0
      %v1839 = vadd.f32 0.0, %v1838
      %1840 = vmatmul.bf16.gmra.mxu0 %v1687
      %v1841 = vpop.f32.mrf.mxu0
      %v1842 = vadd.f32 0.0, %v1841
      %v1843 = vpop.f32.mrf.mxu0
      %v1844 = vadd.f32 0.0, %v1843
      %1845 = vmatmul.bf16.gmra.mxu0 %v1688
      %v1846 = vpop.f32.mrf.mxu0
      %v1847 = vadd.f32 0.0, %v1846
      %v1848 = vpop.f32.mrf.mxu0
      %v1849 = vadd.f32 0.0, %v1848
      %1850 = vmatmul.bf16.gmra.mxu0 %v1689
      %v1851 = vpop.f32.mrf.mxu0
      %v1852 = vadd.f32 0.0, %v1851
      %v1853 = vpop.f32.mrf.mxu0
      %v1854 = vadd.f32 0.0, %v1853
      %1855 = vmatmul.bf16.gmra.mxu0 %v1690
      %v1856 = vpop.f32.mrf.mxu0
      %v1857 = vadd.f32 0.0, %v1856
      %v1858 = vpop.f32.mrf.mxu0
      %v1859 = vadd.f32 0.0, %v1858
      %1860 = vmatmul.bf16.gmra.mxu0 %v1691
      %v1861 = vpop.f32.mrf.mxu0
      %v1862 = vadd.f32 0.0, %v1861
      %v1863 = vpop.f32.mrf.mxu0
      %v1864 = vadd.f32 0.0, %v1863
      %1865 = vmatmul.bf16.gmra.mxu0 %v1692
      %v1866 = vpop.f32.mrf.mxu0
      %v1867 = vadd.f32 0.0, %v1866
      %v1868 = vpop.f32.mrf.mxu0
      %v1869 = vadd.f32 0.0, %v1868
      %1870 = vmatmul.bf16.gmra.mxu0 %v1693
      %v1871 = vpop.f32.mrf.mxu0
      %v1872 = vadd.f32 0.0, %v1871
      %v1873 = vpop.f32.mrf.mxu0
      %v1874 = vadd.f32 0.0, %v1873
      %1875 = vmatmul.bf16.gmra.mxu0 %v1694
      %v1876 = vpop.f32.mrf.mxu0
      %v1877 = vadd.f32 0.0, %v1876
      %v1878 = vpop.f32.mrf.mxu0
      %v1879 = vadd.f32 0.0, %v1878
      %1880 = vmatmul.bf16.gmra.mxu0 %v1695
      %v1881 = vpop.f32.mrf.mxu0
      %v1882 = vadd.f32 0.0, %v1881
      %v1883 = vpop.f32.mrf.mxu0
      %v1884 = vadd.f32 0.0, %v1883
      %1885 = vmatmul.bf16.gmra.mxu0 %v1696
      %v1886 = vpop.f32.mrf.mxu0
      %v1887 = vadd.f32 0.0, %v1886
      %v1888 = vpop.f32.mrf.mxu0
      %v1889 = vadd.f32 0.0, %v1888
      %1890 = vmatmul.bf16.gmra.mxu0 %v1697
      %v1891 = vpop.f32.mrf.mxu0
      %v1892 = vadd.f32 0.0, %v1891
      %v1893 = vpop.f32.mrf.mxu0
      %v1894 = vadd.f32 0.0, %v1893
      %1895 = vmatmul.bf16.gmra.mxu0 %v1698
      %v1896 = vpop.f32.mrf.mxu0
      %v1897 = vadd.f32 0.0, %v1896
      %v1898 = vpop.f32.mrf.mxu0
      %v1899 = vadd.f32 0.0, %v1898
      %1900 = vmatmul.bf16.gmra.mxu0 %v1699
      %v1901 = vpop.f32.mrf.mxu0
      %v1902 = vadd.f32 0.0, %v1901
      %v1903 = vpop.f32.mrf.mxu0
      %v1904 = vadd.f32 0.0, %v1903
      %1905 = vmatmul.bf16.gmra.mxu0 %v1700
      %v1906 = vpop.f32.mrf.mxu0
      %v1907 = vadd.f32 0.0, %v1906
      %v1908 = vpop.f32.mrf.mxu0
      %v1909 = vadd.f32 0.0, %v1908
      %1910 = vmatmul.bf16.gmra.mxu0 %v1701
      %v1911 = vpop.f32.mrf.mxu0
      %v1912 = vadd.f32 0.0, %v1911
      %v1913 = vpop.f32.mrf.mxu0
      %v1914 = vadd.f32 0.0, %v1913
      %1915 = vmatmul.bf16.gmra.mxu0 %v1702
      %v1916 = vpop.f32.mrf.mxu0
      %v1917 = vadd.f32 0.0, %v1916
      %v1918 = vpop.f32.mrf.mxu0
      %v1919 = vadd.f32 0.0, %v1918
      %1920 = vmatmul.bf16.gmra.mxu0 %v1703
      %v1921 = vpop.f32.mrf.mxu0
      %v1922 = vadd.f32 0.0, %v1921
      %v1923 = vpop.f32.mrf.mxu0
      %v1924 = vadd.f32 0.0, %v1923
      %1925 = vmatmul.bf16.gmra.mxu0 %v1704
      %v1926 = vpop.f32.mrf.mxu0
      %v1927 = vadd.f32 0.0, %v1926
      %v1928 = vpop.f32.mrf.mxu0
      %v1929 = vadd.f32 0.0, %v1928
      %1930 = vmatmul.bf16.gmra.mxu0 %v1705
      %v1931 = vpop.f32.mrf.mxu0
      %v1932 = vadd.f32 0.0, %v1931
      %v1933 = vpop.f32.mrf.mxu0
      %v1934 = vadd.f32 0.0, %v1933
      %1935 = vmatmul.bf16.gmra.mxu0 %v1706
      %v1936 = vpop.f32.mrf.mxu0
      %v1937 = vadd.f32 0.0, %v1936
      %v1938 = vpop.f32.mrf.mxu0
      %v1939 = vadd.f32 0.0, %v1938
      %1940 = vdwg.mxu0
      %v1941 = vmax.f32 %v1782, 0.0
      %v1942 = vmax.f32 %v1784, 0.0
      %v1943 = vmax.f32 %v1787, 0.0
      %v1944 = vmax.f32 %v1789, 0.0
      %v1945 = vmax.f32 %v1792, 0.0
      %v1946 = vmax.f32 %v1794, 0.0
      %v1947 = vmax.f32 %v1797, 0.0
      %v1948 = vmax.f32 %v1799, 0.0
      %v1949 = vmax.f32 %v1802, 0.0
      %v1950 = vmax.f32 %v1804, 0.0
      %v1951 = vmax.f32 %v1807, 0.0
      %v1952 = vmax.f32 %v1809, 0.0
      %v1953 = vmax.f32 %v1812, 0.0
      %v1954 = vmax.f32 %v1814, 0.0
      %v1955 = vmax.f32 %v1817, 0.0
      %v1956 = vmax.f32 %v1819, 0.0
      %v1957 = vmax.f32 %v1822, 0.0
      %v1958 = vmax.f32 %v1824, 0.0
      %v1959 = vmax.f32 %v1827, 0.0
      %v1960 = vmax.f32 %v1829, 0.0
      %v1961 = vmax.f32 %v1832, 0.0
      %v1962 = vmax.f32 %v1834, 0.0
      %v1963 = vmax.f32 %v1837, 0.0
      %v1964 = vmax.f32 %v1839, 0.0
      %v1965 = vmax.f32 %v1842, 0.0
      %v1966 = vmax.f32 %v1844, 0.0
      %v1967 = vmax.f32 %v1847, 0.0
      %v1968 = vmax.f32 %v1849, 0.0
      %v1969 = vmax.f32 %v1852, 0.0
      %v1970 = vmax.f32 %v1854, 0.0
      %v1971 = vmax.f32 %v1857, 0.0
      %v1972 = vmax.f32 %v1859, 0.0
      %v1973 = vmax.f32 %v1862, 0.0
      %v1974 = vmax.f32 %v1864, 0.0
      %v1975 = vmax.f32 %v1867, 0.0
      %v1976 = vmax.f32 %v1869, 0.0
      %v1977 = vmax.f32 %v1872, 0.0
      %v1978 = vmax.f32 %v1874, 0.0
      %v1979 = vmax.f32 %v1877, 0.0
      %v1980 = vmax.f32 %v1879, 0.0
      %v1981 = vmax.f32 %v1882, 0.0
      %v1982 = vmax.f32 %v1884, 0.0
      %v1983 = vmax.f32 %v1887, 0.0
      %v1984 = vmax.f32 %v1889, 0.0
      %v1985 = vmax.f32 %v1892, 0.0
      %v1986 = vmax.f32 %v1894, 0.0
      %v1987 = vmax.f32 %v1897, 0.0
      %v1988 = vmax.f32 %v1899, 0.0
      %v1989 = vmax.f32 %v1902, 0.0
      %v1990 = vmax.f32 %v1904, 0.0
      %v1991 = vmax.f32 %v1907, 0.0
      %v1992 = vmax.f32 %v1909, 0.0
      %v1993 = vmax.f32 %v1912, 0.0
      %v1994 = vmax.f32 %v1914, 0.0
      %v1995 = vmax.f32 %v1917, 0.0
      %v1996 = vmax.f32 %v1919, 0.0
      %v1997 = vmax.f32 %v1922, 0.0
      %v1998 = vmax.f32 %v1924, 0.0
      %v1999 = vmax.f32 %v1927, 0.0
      %v2000 = vmax.f32 %v1929, 0.0
      %v2001 = vmax.f32 %v1932, 0.0
      %v2002 = vmax.f32 %v1934, 0.0
      %v2003 = vmax.f32 %v1937, 0.0
      %v2004 = vmax.f32 %v1939, 0.0
      %v2005 = vpack.c.bf16 %v1942, %v1941
      %v2006 = vpack.c.bf16 %v1944, %v1943
      %v2007 = vpack.c.bf16 %v1946, %v1945
      %v2008 = vpack.c.bf16 %v1948, %v1947
      %v2009 = vpack.c.bf16 %v1950, %v1949
      %v2010 = vpack.c.bf16 %v1952, %v1951
      %v2011 = vpack.c.bf16 %v1954, %v1953
      %v2012 = vpack.c.bf16 %v1956, %v1955
      %v2013 = vpack.c.bf16 %v1958, %v1957
      %v2014 = vpack.c.bf16 %v1960, %v1959
      %v2015 = vpack.c.bf16 %v1962, %v1961
      %v2016 = vpack.c.bf16 %v1964, %v1963
      %v2017 = vpack.c.bf16 %v1966, %v1965
      %v2018 = vpack.c.bf16 %v1968, %v1967
      %v2019 = vpack.c.bf16 %v1970, %v1969
      %v2020 = vpack.c.bf16 %v1972, %v1971
      %v2021 = vpack.c.bf16 %v1974, %v1973
      %v2022 = vpack.c.bf16 %v1976, %v1975
      %v2023 = vpack.c.bf16 %v1978, %v1977
      %v2024 = vpack.c.bf16 %v1980, %v1979
      %v2025 = vpack.c.bf16 %v1982, %v1981
      %v2026 = vpack.c.bf16 %v1984, %v1983
      %v2027 = vpack.c.bf16 %v1986, %v1985
      %v2028 = vpack.c.bf16 %v1988, %v1987
      %v2029 = vpack.c.bf16 %v1990, %v1989
      %v2030 = vpack.c.bf16 %v1992, %v1991
      %v2031 = vpack.c.bf16 %v1994, %v1993
      %v2032 = vpack.c.bf16 %v1996, %v1995
      %v2033 = vpack.c.bf16 %v1998, %v1997
      %v2034 = vpack.c.bf16 %v2000, %v1999
      %v2035 = vpack.c.bf16 %v2002, %v2001
      %v2036 = vpack.c.bf16 %v2004, %v2003
      %s2037 = scalar_lea.vmem %s3, 32
      %v2038 = vld [vmem:[%s2037] sm:$0xf]
      %v2039 = vld [vmem:[%s2037 + $0x4] sm:$0xf]
      %v2040 = vld [vmem:[%s2037 + $0x8] sm:$0xf]
      %v2041 = vld [vmem:[%s2037 + $0xc] sm:$0xf]
      %v2042 = vld [vmem:[%s2037 + $0x10] sm:$0xf]
      %v2043 = vld [vmem:[%s2037 + $0x14] sm:$0xf]
      %v2044 = vld [vmem:[%s2037 + $0x18] sm:$0xf]
      %v2045 = vld [vmem:[%s2037 + $0x1c] sm:$0xf]
      %v2054 = vunpack.c.l.b16 %v2038
      %v2055 = vunpack.c.l.b16 %v2039
      %v2056 = vunpack.c.l.b16 %v2040
      %v2057 = vunpack.c.l.b16 %v2041
      %v2058 = vunpack.c.l.b16 %v2042
      %v2059 = vunpack.c.l.b16 %v2043
      %v2060 = vunpack.c.l.b16 %v2044
      %v2061 = vunpack.c.l.b16 %v2045
      %v2062 = vpack.c.b16 %v2055, %v2054
      %v2063 = vpack.c.b16 %v2057, %v2056
      %v2064 = vpack.c.b16 %v2059, %v2058
      %v2065 = vpack.c.b16 %v2061, %v2060
      %v2071 = vsel %vm1080, %v2005, 0
      %v2074 = vsel %vm1080, %v2006, 0
      %v2077 = vsel %vm1080, %v2007, 0
      %v2080 = vsel %vm1080, %v2008, 0
      %v2083 = vsel %vm1080, %v2009, 0
      %v2086 = vsel %vm1080, %v2010, 0
      %v2089 = vsel %vm1080, %v2011, 0
      %v2092 = vsel %vm1080, %v2012, 0
      %v2095 = vsel %vm1080, %v2013, 0
      %v2098 = vsel %vm1080, %v2014, 0
      %v2101 = vsel %vm1080, %v2015, 0
      %v2104 = vsel %vm1080, %v2016, 0
      %v2107 = vsel %vm1080, %v2017, 0
      %v2110 = vsel %vm1080, %v2018, 0
      %v2113 = vsel %vm1080, %v2019, 0
      %v2116 = vsel %vm1080, %v2020, 0
      %v2119 = vsel %vm1080, %v2021, 0
      %v2122 = vsel %vm1080, %v2022, 0
      %v2125 = vsel %vm1080, %v2023, 0
      %v2128 = vsel %vm1080, %v2024, 0
      %v2131 = vsel %vm1080, %v2025, 0
      %v2134 = vsel %vm1080, %v2026, 0
      %v2137 = vsel %vm1080, %v2027, 0
      %v2140 = vsel %vm1080, %v2028, 0
      %v2143 = vsel %vm1080, %v2029, 0
      %v2146 = vsel %vm1080, %v2030, 0
      %v2149 = vsel %vm1080, %v2031, 0
      %v2152 = vsel %vm1080, %v2032, 0
      %v2155 = vsel %vm1080, %v2033, 0
      %v2158 = vsel %vm1080, %v2034, 0
      %v2161 = vsel %vm1080, %v2035, 0
      %v2164 = vsel %vm1080, %v2036, 0
      %2166 = vmatpush.bf16.msra.mxu0 0
      %2167 = vmatpush.bf16.msra.mxu0 0
      %2168 = vmatpush.bf16.msra.mxu0 0
      %2169 = vmatpush.bf16.msra.mxu0 0
      %2170 = vmatpush.bf16.msra.mxu0 %v2065
      %2171 = vmatpush.bf16.msra.mxu0 %v2064
      %2172 = vmatpush.bf16.msra.mxu0 %v2063
      %2173 = vmatpush.bf16.msra.mxu0 %v2062
      %2174 = vmatmul.bf16.gmra.mxu0 %v2071
      %v2175 = vpop.f32.mrf.mxu0
      %v2176 = vadd.f32 0.0, %v2175
      %v2177 = vpop.f32.mrf.mxu0
      %v2178 = vadd.f32 0.0, %v2177
      %2179 = vmatmul.bf16.gmra.mxu0 %v2074
      %v2180 = vpop.f32.mrf.mxu0
      %v2181 = vadd.f32 0.0, %v2180
      %v2182 = vpop.f32.mrf.mxu0
      %v2183 = vadd.f32 0.0, %v2182
      %2184 = vmatmul.bf16.gmra.mxu0 %v2077
      %v2185 = vpop.f32.mrf.mxu0
      %v2186 = vadd.f32 0.0, %v2185
      %v2187 = vpop.f32.mrf.mxu0
      %v2188 = vadd.f32 0.0, %v2187
      %2189 = vmatmul.bf16.gmra.mxu0 %v2080
      %v2190 = vpop.f32.mrf.mxu0
      %v2191 = vadd.f32 0.0, %v2190
      %v2192 = vpop.f32.mrf.mxu0
      %v2193 = vadd.f32 0.0, %v2192
      %2194 = vmatmul.bf16.gmra.mxu0 %v2083
      %v2195 = vpop.f32.mrf.mxu0
      %v2196 = vadd.f32 0.0, %v2195
      %v2197 = vpop.f32.mrf.mxu0
      %v2198 = vadd.f32 0.0, %v2197
      %2199 = vmatmul.bf16.gmra.mxu0 %v2086
      %v2200 = vpop.f32.mrf.mxu0
      %v2201 = vadd.f32 0.0, %v2200
      %v2202 = vpop.f32.mrf.mxu0
      %v2203 = vadd.f32 0.0, %v2202
      %2204 = vmatmul.bf16.gmra.mxu0 %v2089
      %v2205 = vpop.f32.mrf.mxu0
      %v2206 = vadd.f32 0.0, %v2205
      %v2207 = vpop.f32.mrf.mxu0
      %v2208 = vadd.f32 0.0, %v2207
      %2209 = vmatmul.bf16.gmra.mxu0 %v2092
      %v2210 = vpop.f32.mrf.mxu0
      %v2211 = vadd.f32 0.0, %v2210
      %v2212 = vpop.f32.mrf.mxu0
      %v2213 = vadd.f32 0.0, %v2212
      %2214 = vmatmul.bf16.gmra.mxu0 %v2095
      %v2215 = vpop.f32.mrf.mxu0
      %v2216 = vadd.f32 0.0, %v2215
      %v2217 = vpop.f32.mrf.mxu0
      %v2218 = vadd.f32 0.0, %v2217
      %2219 = vmatmul.bf16.gmra.mxu0 %v2098
      %v2220 = vpop.f32.mrf.mxu0
      %v2221 = vadd.f32 0.0, %v2220
      %v2222 = vpop.f32.mrf.mxu0
      %v2223 = vadd.f32 0.0, %v2222
      %2224 = vmatmul.bf16.gmra.mxu0 %v2101
      %v2225 = vpop.f32.mrf.mxu0
      %v2226 = vadd.f32 0.0, %v2225
      %v2227 = vpop.f32.mrf.mxu0
      %v2228 = vadd.f32 0.0, %v2227
      %2229 = vmatmul.bf16.gmra.mxu0 %v2104
      %v2230 = vpop.f32.mrf.mxu0
      %v2231 = vadd.f32 0.0, %v2230
      %v2232 = vpop.f32.mrf.mxu0
      %v2233 = vadd.f32 0.0, %v2232
      %2234 = vmatmul.bf16.gmra.mxu0 %v2107
      %v2235 = vpop.f32.mrf.mxu0
      %v2236 = vadd.f32 0.0, %v2235
      %v2237 = vpop.f32.mrf.mxu0
      %v2238 = vadd.f32 0.0, %v2237
      %2239 = vmatmul.bf16.gmra.mxu0 %v2110
      %v2240 = vpop.f32.mrf.mxu0
      %v2241 = vadd.f32 0.0, %v2240
      %v2242 = vpop.f32.mrf.mxu0
      %v2243 = vadd.f32 0.0, %v2242
      %2244 = vmatmul.bf16.gmra.mxu0 %v2113
      %v2245 = vpop.f32.mrf.mxu0
      %v2246 = vadd.f32 0.0, %v2245
      %v2247 = vpop.f32.mrf.mxu0
      %v2248 = vadd.f32 0.0, %v2247
      %2249 = vmatmul.bf16.gmra.mxu0 %v2116
      %v2250 = vpop.f32.mrf.mxu0
      %v2251 = vadd.f32 0.0, %v2250
      %v2252 = vpop.f32.mrf.mxu0
      %v2253 = vadd.f32 0.0, %v2252
      %2254 = vmatmul.bf16.gmra.mxu0 %v2119
      %v2255 = vpop.f32.mrf.mxu0
      %v2256 = vadd.f32 0.0, %v2255
      %v2257 = vpop.f32.mrf.mxu0
      %v2258 = vadd.f32 0.0, %v2257
      %2259 = vmatmul.bf16.gmra.mxu0 %v2122
      %v2260 = vpop.f32.mrf.mxu0
      %v2261 = vadd.f32 0.0, %v2260
      %v2262 = vpop.f32.mrf.mxu0
      %v2263 = vadd.f32 0.0, %v2262
      %2264 = vmatmul.bf16.gmra.mxu0 %v2125
      %v2265 = vpop.f32.mrf.mxu0
      %v2266 = vadd.f32 0.0, %v2265
      %v2267 = vpop.f32.mrf.mxu0
      %v2268 = vadd.f32 0.0, %v2267
      %2269 = vmatmul.bf16.gmra.mxu0 %v2128
      %v2270 = vpop.f32.mrf.mxu0
      %v2271 = vadd.f32 0.0, %v2270
      %v2272 = vpop.f32.mrf.mxu0
      %v2273 = vadd.f32 0.0, %v2272
      %2274 = vmatmul.bf16.gmra.mxu0 %v2131
      %v2275 = vpop.f32.mrf.mxu0
      %v2276 = vadd.f32 0.0, %v2275
      %v2277 = vpop.f32.mrf.mxu0
      %v2278 = vadd.f32 0.0, %v2277
      %2279 = vmatmul.bf16.gmra.mxu0 %v2134
      %v2280 = vpop.f32.mrf.mxu0
      %v2281 = vadd.f32 0.0, %v2280
      %v2282 = vpop.f32.mrf.mxu0
      %v2283 = vadd.f32 0.0, %v2282
      %2284 = vmatmul.bf16.gmra.mxu0 %v2137
      %v2285 = vpop.f32.mrf.mxu0
      %v2286 = vadd.f32 0.0, %v2285
      %v2287 = vpop.f32.mrf.mxu0
      %v2288 = vadd.f32 0.0, %v2287
      %2289 = vmatmul.bf16.gmra.mxu0 %v2140
      %v2290 = vpop.f32.mrf.mxu0
      %v2291 = vadd.f32 0.0, %v2290
      %v2292 = vpop.f32.mrf.mxu0
      %v2293 = vadd.f32 0.0, %v2292
      %2294 = vmatmul.bf16.gmra.mxu0 %v2143
      %v2295 = vpop.f32.mrf.mxu0
      %v2296 = vadd.f32 0.0, %v2295
      %v2297 = vpop.f32.mrf.mxu0
      %v2298 = vadd.f32 0.0, %v2297
      %2299 = vmatmul.bf16.gmra.mxu0 %v2146
      %v2300 = vpop.f32.mrf.mxu0
      %v2301 = vadd.f32 0.0, %v2300
      %v2302 = vpop.f32.mrf.mxu0
      %v2303 = vadd.f32 0.0, %v2302
      %2304 = vmatmul.bf16.gmra.mxu0 %v2149
      %v2305 = vpop.f32.mrf.mxu0
      %v2306 = vadd.f32 0.0, %v2305
      %v2307 = vpop.f32.mrf.mxu0
      %v2308 = vadd.f32 0.0, %v2307
      %2309 = vmatmul.bf16.gmra.mxu0 %v2152
      %v2310 = vpop.f32.mrf.mxu0
      %v2311 = vadd.f32 0.0, %v2310
      %v2312 = vpop.f32.mrf.mxu0
      %v2313 = vadd.f32 0.0, %v2312
      %2314 = vmatmul.bf16.gmra.mxu0 %v2155
      %v2315 = vpop.f32.mrf.mxu0
      %v2316 = vadd.f32 0.0, %v2315
      %v2317 = vpop.f32.mrf.mxu0
      %v2318 = vadd.f32 0.0, %v2317
      %2319 = vmatmul.bf16.gmra.mxu0 %v2158
      %v2320 = vpop.f32.mrf.mxu0
      %v2321 = vadd.f32 0.0, %v2320
      %v2322 = vpop.f32.mrf.mxu0
      %v2323 = vadd.f32 0.0, %v2322
      %2324 = vmatmul.bf16.gmra.mxu0 %v2161
      %v2325 = vpop.f32.mrf.mxu0
      %v2326 = vadd.f32 0.0, %v2325
      %v2327 = vpop.f32.mrf.mxu0
      %v2328 = vadd.f32 0.0, %v2327
      %2329 = vmatmul.bf16.gmra.mxu0 %v2164
      %v2330 = vpop.f32.mrf.mxu0
      %v2331 = vadd.f32 0.0, %v2330
      %v2332 = vpop.f32.mrf.mxu0
      %v2333 = vadd.f32 0.0, %v2332
      %2334 = vdwg.mxu0
      %v2335 = vmax.f32 %v2176, 0.0
      %v2336 = vmax.f32 %v2178, 0.0
      %v2337 = vmax.f32 %v2181, 0.0
      %v2338 = vmax.f32 %v2183, 0.0
      %v2339 = vmax.f32 %v2186, 0.0
      %v2340 = vmax.f32 %v2188, 0.0
      %v2341 = vmax.f32 %v2191, 0.0
      %v2342 = vmax.f32 %v2193, 0.0
      %v2343 = vmax.f32 %v2196, 0.0
      %v2344 = vmax.f32 %v2198, 0.0
      %v2345 = vmax.f32 %v2201, 0.0
      %v2346 = vmax.f32 %v2203, 0.0
      %v2347 = vmax.f32 %v2206, 0.0
      %v2348 = vmax.f32 %v2208, 0.0
      %v2349 = vmax.f32 %v2211, 0.0
      %v2350 = vmax.f32 %v2213, 0.0
      %v2351 = vmax.f32 %v2216, 0.0
      %v2352 = vmax.f32 %v2218, 0.0
      %v2353 = vmax.f32 %v2221, 0.0
      %v2354 = vmax.f32 %v2223, 0.0
      %v2355 = vmax.f32 %v2226, 0.0
      %v2356 = vmax.f32 %v2228, 0.0
      %v2357 = vmax.f32 %v2231, 0.0
      %v2358 = vmax.f32 %v2233, 0.0
      %v2359 = vmax.f32 %v2236, 0.0
      %v2360 = vmax.f32 %v2238, 0.0
      %v2361 = vmax.f32 %v2241, 0.0
      %v2362 = vmax.f32 %v2243, 0.0
      %v2363 = vmax.f32 %v2246, 0.0
      %v2364 = vmax.f32 %v2248, 0.0
      %v2365 = vmax.f32 %v2251, 0.0
      %v2366 = vmax.f32 %v2253, 0.0
      %v2367 = vmax.f32 %v2256, 0.0
      %v2368 = vmax.f32 %v2258, 0.0
      %v2369 = vmax.f32 %v2261, 0.0
      %v2370 = vmax.f32 %v2263, 0.0
      %v2371 = vmax.f32 %v2266, 0.0
      %v2372 = vmax.f32 %v2268, 0.0
      %v2373 = vmax.f32 %v2271, 0.0
      %v2374 = vmax.f32 %v2273, 0.0
      %v2375 = vmax.f32 %v2276, 0.0
      %v2376 = vmax.f32 %v2278, 0.0
      %v2377 = vmax.f32 %v2281, 0.0
      %v2378 = vmax.f32 %v2283, 0.0
      %v2379 = vmax.f32 %v2286, 0.0
      %v2380 = vmax.f32 %v2288, 0.0
      %v2381 = vmax.f32 %v2291, 0.0
      %v2382 = vmax.f32 %v2293, 0.0
      %v2383 = vmax.f32 %v2296, 0.0
      %v2384 = vmax.f32 %v2298, 0.0
      %v2385 = vmax.f32 %v2301, 0.0
      %v2386 = vmax.f32 %v2303, 0.0
      %v2387 = vmax.f32 %v2306, 0.0
      %v2388 = vmax.f32 %v2308, 0.0
      %v2389 = vmax.f32 %v2311, 0.0
      %v2390 = vmax.f32 %v2313, 0.0
      %v2391 = vmax.f32 %v2316, 0.0
      %v2392 = vmax.f32 %v2318, 0.0
      %v2393 = vmax.f32 %v2321, 0.0
      %v2394 = vmax.f32 %v2323, 0.0
      %v2395 = vmax.f32 %v2326, 0.0
      %v2396 = vmax.f32 %v2328, 0.0
      %v2397 = vmax.f32 %v2331, 0.0
      %v2398 = vmax.f32 %v2333, 0.0
      %v2399 = vadd.f32 %v2335, %v1187
      %v2400 = vadd.f32 %v2336, %v1189
      %v2401 = vadd.f32 %v2337, %v1192
      %v2402 = vadd.f32 %v2338, %v1194
      %v2403 = vadd.f32 %v2339, %v1197
      %v2404 = vadd.f32 %v2340, %v1199
      %v2405 = vadd.f32 %v2341, %v1202
      %v2406 = vadd.f32 %v2342, %v1204
      %v2407 = vadd.f32 %v2343, %v1207
      %v2408 = vadd.f32 %v2344, %v1209
      %v2409 = vadd.f32 %v2345, %v1212
      %v2410 = vadd.f32 %v2346, %v1214
      %v2411 = vadd.f32 %v2347, %v1217
      %v2412 = vadd.f32 %v2348, %v1219
      %v2413 = vadd.f32 %v2349, %v1222
      %v2414 = vadd.f32 %v2350, %v1224
      %v2415 = vadd.f32 %v2351, %v1227
      %v2416 = vadd.f32 %v2352, %v1229
      %v2417 = vadd.f32 %v2353, %v1232
      %v2418 = vadd.f32 %v2354, %v1234
      %v2419 = vadd.f32 %v2355, %v1237
      %v2420 = vadd.f32 %v2356, %v1239
      %v2421 = vadd.f32 %v2357, %v1242
      %v2422 = vadd.f32 %v2358, %v1244
      %v2423 = vadd.f32 %v2359, %v1247
      %v2424 = vadd.f32 %v2360, %v1249
      %v2425 = vadd.f32 %v2361, %v1252
      %v2426 = vadd.f32 %v2362, %v1254
      %v2427 = vadd.f32 %v2363, %v1257
      %v2428 = vadd.f32 %v2364, %v1259
      %v2429 = vadd.f32 %v2365, %v1262
      %v2430 = vadd.f32 %v2366, %v1264
      %v2431 = vadd.f32 %v2367, %v1267
      %v2432 = vadd.f32 %v2368, %v1269
      %v2433 = vadd.f32 %v2369, %v1272
      %v2434 = vadd.f32 %v2370, %v1274
      %v2435 = vadd.f32 %v2371, %v1277
      %v2436 = vadd.f32 %v2372, %v1279
      %v2437 = vadd.f32 %v2373, %v1282
      %v2438 = vadd.f32 %v2374, %v1284
      %v2439 = vadd.f32 %v2375, %v1287
      %v2440 = vadd.f32 %v2376, %v1289
      %v2441 = vadd.f32 %v2377, %v1292
      %v2442 = vadd.f32 %v2378, %v1294
      %v2443 = vadd.f32 %v2379, %v1297
      %v2444 = vadd.f32 %v2380, %v1299
      %v2445 = vadd.f32 %v2381, %v1302
      %v2446 = vadd.f32 %v2382, %v1304
      %v2447 = vadd.f32 %v2383, %v1307
      %v2448 = vadd.f32 %v2384, %v1309
      %v2449 = vadd.f32 %v2385, %v1312
      %v2450 = vadd.f32 %v2386, %v1314
      %v2451 = vadd.f32 %v2387, %v1317
      %v2452 = vadd.f32 %v2388, %v1319
      %v2453 = vadd.f32 %v2389, %v1322
      %v2454 = vadd.f32 %v2390, %v1324
      %v2455 = vadd.f32 %v2391, %v1327
      %v2456 = vadd.f32 %v2392, %v1329
      %v2457 = vadd.f32 %v2393, %v1332
      %v2458 = vadd.f32 %v2394, %v1334
      %v2459 = vadd.f32 %v2395, %v1337
      %v2460 = vadd.f32 %v2396, %v1339
      %v2461 = vadd.f32 %v2397, %v1342
      %v2462 = vadd.f32 %v2398, %v1344
      %v2463 = vpack.c.bf16 %v2400, %v2399
      %v2464 = vpack.c.bf16 %v2402, %v2401
      %v2465 = vpack.c.bf16 %v2404, %v2403
      %v2466 = vpack.c.bf16 %v2406, %v2405
      %v2467 = vpack.c.bf16 %v2408, %v2407
      %v2468 = vpack.c.bf16 %v2410, %v2409
      %v2469 = vpack.c.bf16 %v2412, %v2411
      %v2470 = vpack.c.bf16 %v2414, %v2413
      %v2471 = vpack.c.bf16 %v2416, %v2415
      %v2472 = vpack.c.bf16 %v2418, %v2417
      %v2473 = vpack.c.bf16 %v2420, %v2419
      %v2474 = vpack.c.bf16 %v2422, %v2421
      %v2475 = vpack.c.bf16 %v2424, %v2423
      %v2476 = vpack.c.bf16 %v2426, %v2425
      %v2477 = vpack.c.bf16 %v2428, %v2427
      %v2478 = vpack.c.bf16 %v2430, %v2429
      %v2479 = vpack.c.bf16 %v2432, %v2431
      %v2480 = vpack.c.bf16 %v2434, %v2433
      %v2481 = vpack.c.bf16 %v2436, %v2435
      %v2482 = vpack.c.bf16 %v2438, %v2437
      %v2483 = vpack.c.bf16 %v2440, %v2439
      %v2484 = vpack.c.bf16 %v2442, %v2441
      %v2485 = vpack.c.bf16 %v2444, %v2443
      %v2486 = vpack.c.bf16 %v2446, %v2445
      %v2487 = vpack.c.bf16 %v2448, %v2447
      %v2488 = vpack.c.bf16 %v2450, %v2449
      %v2489 = vpack.c.bf16 %v2452, %v2451
      %v2490 = vpack.c.bf16 %v2454, %v2453
      %v2491 = vpack.c.bf16 %v2456, %v2455
      %v2492 = vpack.c.bf16 %v2458, %v2457
      %v2493 = vpack.c.bf16 %v2460, %v2459
      %v2494 = vpack.c.bf16 %v2462, %v2461
      %v2495 = vld [vmem:[%s5] sm:$0xf]
      %v2496 = vld [vmem:[%s5 + $0x4] sm:$0xf]
      %v2497 = vld [vmem:[%s5 + $0x8] sm:$0xf]
      %v2498 = vld [vmem:[%s5 + $0xc] sm:$0xf]
      %v2499 = vld [vmem:[%s5 + $0x10] sm:$0xf]
      %v2500 = vld [vmem:[%s5 + $0x14] sm:$0xf]
      %v2501 = vld [vmem:[%s5 + $0x18] sm:$0xf]
      %v2502 = vld [vmem:[%s5 + $0x1c] sm:$0xf]
      %v2503 = vld [vmem:[%s5 + $0x20] sm:$0xf]
      %v2504 = vld [vmem:[%s5 + $0x24] sm:$0xf]
      %v2505 = vld [vmem:[%s5 + $0x28] sm:$0xf]
      %v2506 = vld [vmem:[%s5 + $0x2c] sm:$0xf]
      %v2507 = vld [vmem:[%s5 + $0x30] sm:$0xf]
      %v2508 = vld [vmem:[%s5 + $0x34] sm:$0xf]
      %v2509 = vld [vmem:[%s5 + $0x38] sm:$0xf]
      %v2510 = vld [vmem:[%s5 + $0x3c] sm:$0xf]
      %v2527 = vunpack.c.l.b16 %v2495
      %v2528 = vunpack.c.l.b16 %v2496
      %v2529 = vunpack.c.l.b16 %v2497
      %v2530 = vunpack.c.l.b16 %v2498
      %v2531 = vunpack.c.l.b16 %v2499
      %v2532 = vunpack.c.l.b16 %v2500
      %v2533 = vunpack.c.l.b16 %v2501
      %v2534 = vunpack.c.l.b16 %v2502
      %v2535 = vunpack.c.l.b16 %v2503
      %v2536 = vunpack.c.l.b16 %v2504
      %v2537 = vunpack.c.l.b16 %v2505
      %v2538 = vunpack.c.l.b16 %v2506
      %v2539 = vunpack.c.l.b16 %v2507
      %v2540 = vunpack.c.l.b16 %v2508
      %v2541 = vunpack.c.l.b16 %v2509
      %v2542 = vunpack.c.l.b16 %v2510
      %v2543 = vpack.c.b16 %v2528, %v2527
      %v2544 = vpack.c.b16 %v2530, %v2529
      %v2545 = vpack.c.b16 %v2532, %v2531
      %v2546 = vpack.c.b16 %v2534, %v2533
      %v2547 = vpack.c.b16 %v2536, %v2535
      %v2548 = vpack.c.b16 %v2538, %v2537
      %v2549 = vpack.c.b16 %v2540, %v2539
      %v2550 = vpack.c.b16 %v2542, %v2541
      %2559 = vmatpush.bf16.msra.mxu0 %v2550
      %2560 = vmatpush.bf16.msra.mxu0 %v2549
      %2561 = vmatpush.bf16.msra.mxu0 %v2548
      %2562 = vmatpush.bf16.msra.mxu0 %v2547
      %2563 = vmatpush.bf16.msra.mxu0 %v2546
      %2564 = vmatpush.bf16.msra.mxu0 %v2545
      %2565 = vmatpush.bf16.msra.mxu0 %v2544
      %2566 = vmatpush.bf16.msra.mxu0 %v2543
      %2567 = vmatmul.bf16.gmra.mxu0 %v2463
      %v2568 = vpop.f32.mrf.mxu0
      %v2569 = vadd.f32 0.0, %v2568
      %v2570 = vpop.f32.mrf.mxu0
      %v2571 = vadd.f32 0.0, %v2570
      %2572 = vmatmul.bf16.gmra.mxu0 %v2464
      %v2573 = vpop.f32.mrf.mxu0
      %v2574 = vadd.f32 0.0, %v2573
      %v2575 = vpop.f32.mrf.mxu0
      %v2576 = vadd.f32 0.0, %v2575
      %2577 = vmatmul.bf16.gmra.mxu0 %v2465
      %v2578 = vpop.f32.mrf.mxu0
      %v2579 = vadd.f32 0.0, %v2578
      %v2580 = vpop.f32.mrf.mxu0
      %v2581 = vadd.f32 0.0, %v2580
      %2582 = vmatmul.bf16.gmra.mxu0 %v2466
      %v2583 = vpop.f32.mrf.mxu0
      %v2584 = vadd.f32 0.0, %v2583
      %v2585 = vpop.f32.mrf.mxu0
      %v2586 = vadd.f32 0.0, %v2585
      %2587 = vmatmul.bf16.gmra.mxu0 %v2467
      %v2588 = vpop.f32.mrf.mxu0
      %v2589 = vadd.f32 0.0, %v2588
      %v2590 = vpop.f32.mrf.mxu0
      %v2591 = vadd.f32 0.0, %v2590
      %2592 = vmatmul.bf16.gmra.mxu0 %v2468
      %v2593 = vpop.f32.mrf.mxu0
      %v2594 = vadd.f32 0.0, %v2593
      %v2595 = vpop.f32.mrf.mxu0
      %v2596 = vadd.f32 0.0, %v2595
      %2597 = vmatmul.bf16.gmra.mxu0 %v2469
      %v2598 = vpop.f32.mrf.mxu0
      %v2599 = vadd.f32 0.0, %v2598
      %v2600 = vpop.f32.mrf.mxu0
      %v2601 = vadd.f32 0.0, %v2600
      %2602 = vmatmul.bf16.gmra.mxu0 %v2470
      %v2603 = vpop.f32.mrf.mxu0
      %v2604 = vadd.f32 0.0, %v2603
      %v2605 = vpop.f32.mrf.mxu0
      %v2606 = vadd.f32 0.0, %v2605
      %2607 = vmatmul.bf16.gmra.mxu0 %v2471
      %v2608 = vpop.f32.mrf.mxu0
      %v2609 = vadd.f32 0.0, %v2608
      %v2610 = vpop.f32.mrf.mxu0
      %v2611 = vadd.f32 0.0, %v2610
      %2612 = vmatmul.bf16.gmra.mxu0 %v2472
      %v2613 = vpop.f32.mrf.mxu0
      %v2614 = vadd.f32 0.0, %v2613
      %v2615 = vpop.f32.mrf.mxu0
      %v2616 = vadd.f32 0.0, %v2615
      %2617 = vmatmul.bf16.gmra.mxu0 %v2473
      %v2618 = vpop.f32.mrf.mxu0
      %v2619 = vadd.f32 0.0, %v2618
      %v2620 = vpop.f32.mrf.mxu0
      %v2621 = vadd.f32 0.0, %v2620
      %2622 = vmatmul.bf16.gmra.mxu0 %v2474
      %v2623 = vpop.f32.mrf.mxu0
      %v2624 = vadd.f32 0.0, %v2623
      %v2625 = vpop.f32.mrf.mxu0
      %v2626 = vadd.f32 0.0, %v2625
      %2627 = vmatmul.bf16.gmra.mxu0 %v2475
      %v2628 = vpop.f32.mrf.mxu0
      %v2629 = vadd.f32 0.0, %v2628
      %v2630 = vpop.f32.mrf.mxu0
      %v2631 = vadd.f32 0.0, %v2630
      %2632 = vmatmul.bf16.gmra.mxu0 %v2476
      %v2633 = vpop.f32.mrf.mxu0
      %v2634 = vadd.f32 0.0, %v2633
      %v2635 = vpop.f32.mrf.mxu0
      %v2636 = vadd.f32 0.0, %v2635
      %2637 = vmatmul.bf16.gmra.mxu0 %v2477
      %v2638 = vpop.f32.mrf.mxu0
      %v2639 = vadd.f32 0.0, %v2638
      %v2640 = vpop.f32.mrf.mxu0
      %v2641 = vadd.f32 0.0, %v2640
      %2642 = vmatmul.bf16.gmra.mxu0 %v2478
      %v2643 = vpop.f32.mrf.mxu0
      %v2644 = vadd.f32 0.0, %v2643
      %v2645 = vpop.f32.mrf.mxu0
      %v2646 = vadd.f32 0.0, %v2645
      %2647 = vmatmul.bf16.gmra.mxu0 %v2479
      %v2648 = vpop.f32.mrf.mxu0
      %v2649 = vadd.f32 0.0, %v2648
      %v2650 = vpop.f32.mrf.mxu0
      %v2651 = vadd.f32 0.0, %v2650
      %2652 = vmatmul.bf16.gmra.mxu0 %v2480
      %v2653 = vpop.f32.mrf.mxu0
      %v2654 = vadd.f32 0.0, %v2653
      %v2655 = vpop.f32.mrf.mxu0
      %v2656 = vadd.f32 0.0, %v2655
      %2657 = vmatmul.bf16.gmra.mxu0 %v2481
      %v2658 = vpop.f32.mrf.mxu0
      %v2659 = vadd.f32 0.0, %v2658
      %v2660 = vpop.f32.mrf.mxu0
      %v2661 = vadd.f32 0.0, %v2660
      %2662 = vmatmul.bf16.gmra.mxu0 %v2482
      %v2663 = vpop.f32.mrf.mxu0
      %v2664 = vadd.f32 0.0, %v2663
      %v2665 = vpop.f32.mrf.mxu0
      %v2666 = vadd.f32 0.0, %v2665
      %2667 = vmatmul.bf16.gmra.mxu0 %v2483
      %v2668 = vpop.f32.mrf.mxu0
      %v2669 = vadd.f32 0.0, %v2668
      %v2670 = vpop.f32.mrf.mxu0
      %v2671 = vadd.f32 0.0, %v2670
      %2672 = vmatmul.bf16.gmra.mxu0 %v2484
      %v2673 = vpop.f32.mrf.mxu0
      %v2674 = vadd.f32 0.0, %v2673
      %v2675 = vpop.f32.mrf.mxu0
      %v2676 = vadd.f32 0.0, %v2675
      %2677 = vmatmul.bf16.gmra.mxu0 %v2485
      %v2678 = vpop.f32.mrf.mxu0
      %v2679 = vadd.f32 0.0, %v2678
      %v2680 = vpop.f32.mrf.mxu0
      %v2681 = vadd.f32 0.0, %v2680
      %2682 = vmatmul.bf16.gmra.mxu0 %v2486
      %v2683 = vpop.f32.mrf.mxu0
      %v2684 = vadd.f32 0.0, %v2683
      %v2685 = vpop.f32.mrf.mxu0
      %v2686 = vadd.f32 0.0, %v2685
      %2687 = vmatmul.bf16.gmra.mxu0 %v2487
      %v2688 = vpop.f32.mrf.mxu0
      %v2689 = vadd.f32 0.0, %v2688
      %v2690 = vpop.f32.mrf.mxu0
      %v2691 = vadd.f32 0.0, %v2690
      %2692 = vmatmul.bf16.gmra.mxu0 %v2488
      %v2693 = vpop.f32.mrf.mxu0
      %v2694 = vadd.f32 0.0, %v2693
      %v2695 = vpop.f32.mrf.mxu0
      %v2696 = vadd.f32 0.0, %v2695
      %2697 = vmatmul.bf16.gmra.mxu0 %v2489
      %v2698 = vpop.f32.mrf.mxu0
      %v2699 = vadd.f32 0.0, %v2698
      %v2700 = vpop.f32.mrf.mxu0
      %v2701 = vadd.f32 0.0, %v2700
      %2702 = vmatmul.bf16.gmra.mxu0 %v2490
      %v2703 = vpop.f32.mrf.mxu0
      %v2704 = vadd.f32 0.0, %v2703
      %v2705 = vpop.f32.mrf.mxu0
      %v2706 = vadd.f32 0.0, %v2705
      %2707 = vmatmul.bf16.gmra.mxu0 %v2491
      %v2708 = vpop.f32.mrf.mxu0
      %v2709 = vadd.f32 0.0, %v2708
      %v2710 = vpop.f32.mrf.mxu0
      %v2711 = vadd.f32 0.0, %v2710
      %2712 = vmatmul.bf16.gmra.mxu0 %v2492
      %v2713 = vpop.f32.mrf.mxu0
      %v2714 = vadd.f32 0.0, %v2713
      %v2715 = vpop.f32.mrf.mxu0
      %v2716 = vadd.f32 0.0, %v2715
      %2717 = vmatmul.bf16.gmra.mxu0 %v2493
      %v2718 = vpop.f32.mrf.mxu0
      %v2719 = vadd.f32 0.0, %v2718
      %v2720 = vpop.f32.mrf.mxu0
      %v2721 = vadd.f32 0.0, %v2720
      %2722 = vmatmul.bf16.gmra.mxu0 %v2494
      %v2723 = vpop.f32.mrf.mxu0
      %v2724 = vadd.f32 0.0, %v2723
      %v2725 = vpop.f32.mrf.mxu0
      %v2726 = vadd.f32 0.0, %v2725
      %2727 = vdwg.mxu0
      %vm2728 = vcmask 31744
      %2729 = vst.msk [vmem:[%s253] sm:$0xff] %vm2728, %v2569
      %2730 = vst.msk [vmem:[%s253 + $0x8] sm:$0xff] %vm2728, %v2571
      %2731 = vst.msk [vmem:[%s253 + $0x10] sm:$0xff] %vm2728, %v2574
      %2732 = vst.msk [vmem:[%s253 + $0x18] sm:$0xff] %vm2728, %v2576
      %2733 = vst.msk [vmem:[%s253 + $0x20] sm:$0xff] %vm2728, %v2579
      %2734 = vst.msk [vmem:[%s253 + $0x28] sm:$0xff] %vm2728, %v2581
      %2735 = vst.msk [vmem:[%s253 + $0x30] sm:$0xff] %vm2728, %v2584
      %2736 = vst.msk [vmem:[%s253 + $0x38] sm:$0xff] %vm2728, %v2586
      %2737 = vst.msk [vmem:[%s253 + $0x40] sm:$0xff] %vm2728, %v2589
      %2738 = vst.msk [vmem:[%s253 + $0x48] sm:$0xff] %vm2728, %v2591
      %2739 = vst.msk [vmem:[%s253 + $0x50] sm:$0xff] %vm2728, %v2594
      %2740 = vst.msk [vmem:[%s253 + $0x58] sm:$0xff] %vm2728, %v2596
      %2741 = vst.msk [vmem:[%s253 + $0x60] sm:$0xff] %vm2728, %v2599
      %2742 = vst.msk [vmem:[%s253 + $0x68] sm:$0xff] %vm2728, %v2601
      %2743 = vst.msk [vmem:[%s253 + $0x70] sm:$0xff] %vm2728, %v2604
      %2744 = vst.msk [vmem:[%s253 + $0x78] sm:$0xff] %vm2728, %v2606
      %2745 = vst.msk [vmem:[%s253 + $0x80] sm:$0xff] %vm2728, %v2609
      %2746 = vst.msk [vmem:[%s253 + $0x88] sm:$0xff] %vm2728, %v2611
      %2747 = vst.msk [vmem:[%s253 + $0x90] sm:$0xff] %vm2728, %v2614
      %2748 = vst.msk [vmem:[%s253 + $0x98] sm:$0xff] %vm2728, %v2616
      %2749 = vst.msk [vmem:[%s253 + $0xa0] sm:$0xff] %vm2728, %v2619
      %2750 = vst.msk [vmem:[%s253 + $0xa8] sm:$0xff] %vm2728, %v2621
      %2751 = vst.msk [vmem:[%s253 + $0xb0] sm:$0xff] %vm2728, %v2624
      %2752 = vst.msk [vmem:[%s253 + $0xb8] sm:$0xff] %vm2728, %v2626
      %2753 = vst.msk [vmem:[%s253 + $0xc0] sm:$0xff] %vm2728, %v2629
      %2754 = vst.msk [vmem:[%s253 + $0xc8] sm:$0xff] %vm2728, %v2631
      %2755 = vst.msk [vmem:[%s253 + $0xd0] sm:$0xff] %vm2728, %v2634
      %2756 = vst.msk [vmem:[%s253 + $0xd8] sm:$0xff] %vm2728, %v2636
      %2757 = vst.msk [vmem:[%s253 + $0xe0] sm:$0xff] %vm2728, %v2639
      %2758 = vst.msk [vmem:[%s253 + $0xe8] sm:$0xff] %vm2728, %v2641
      %2759 = vst.msk [vmem:[%s253 + $0xf0] sm:$0xff] %vm2728, %v2644
      %2760 = vst.msk [vmem:[%s253 + $0xf8] sm:$0xff] %vm2728, %v2646
      %2761 = vst.msk [vmem:[%s253 + $0x100] sm:$0xff] %vm2728, %v2649
      %2762 = vst.msk [vmem:[%s253 + $0x108] sm:$0xff] %vm2728, %v2651
      %2763 = vst.msk [vmem:[%s253 + $0x110] sm:$0xff] %vm2728, %v2654
      %2764 = vst.msk [vmem:[%s253 + $0x118] sm:$0xff] %vm2728, %v2656
      %2765 = vst.msk [vmem:[%s253 + $0x120] sm:$0xff] %vm2728, %v2659
      %2766 = vst.msk [vmem:[%s253 + $0x128] sm:$0xff] %vm2728, %v2661
      %2767 = vst.msk [vmem:[%s253 + $0x130] sm:$0xff] %vm2728, %v2664
      %2768 = vst.msk [vmem:[%s253 + $0x138] sm:$0xff] %vm2728, %v2666
      %2769 = vst.msk [vmem:[%s253 + $0x140] sm:$0xff] %vm2728, %v2669
      %2770 = vst.msk [vmem:[%s253 + $0x148] sm:$0xff] %vm2728, %v2671
      %2771 = vst.msk [vmem:[%s253 + $0x150] sm:$0xff] %vm2728, %v2674
      %2772 = vst.msk [vmem:[%s253 + $0x158] sm:$0xff] %vm2728, %v2676
      %2773 = vst.msk [vmem:[%s253 + $0x160] sm:$0xff] %vm2728, %v2679
      %2774 = vst.msk [vmem:[%s253 + $0x168] sm:$0xff] %vm2728, %v2681
      %2775 = vst.msk [vmem:[%s253 + $0x170] sm:$0xff] %vm2728, %v2684
      %2776 = vst.msk [vmem:[%s253 + $0x178] sm:$0xff] %vm2728, %v2686
      %2777 = vst.msk [vmem:[%s253 + $0x180] sm:$0xff] %vm2728, %v2689
      %2778 = vst.msk [vmem:[%s253 + $0x188] sm:$0xff] %vm2728, %v2691
      %2779 = vst.msk [vmem:[%s253 + $0x190] sm:$0xff] %vm2728, %v2694
      %2780 = vst.msk [vmem:[%s253 + $0x198] sm:$0xff] %vm2728, %v2696
      %2781 = vst.msk [vmem:[%s253 + $0x1a0] sm:$0xff] %vm2728, %v2699
      %2782 = vst.msk [vmem:[%s253 + $0x1a8] sm:$0xff] %vm2728, %v2701
      %2783 = vst.msk [vmem:[%s253 + $0x1b0] sm:$0xff] %vm2728, %v2704
      %2784 = vst.msk [vmem:[%s253 + $0x1b8] sm:$0xff] %vm2728, %v2706
      %2785 = vst.msk [vmem:[%s253 + $0x1c0] sm:$0xff] %vm2728, %v2709
      %2786 = vst.msk [vmem:[%s253 + $0x1c8] sm:$0xff] %vm2728, %v2711
      %2787 = vst.msk [vmem:[%s253 + $0x1d0] sm:$0xff] %vm2728, %v2714
      %2788 = vst.msk [vmem:[%s253 + $0x1d8] sm:$0xff] %vm2728, %v2716
      %2789 = vst.msk [vmem:[%s253 + $0x1e0] sm:$0xff] %vm2728, %v2719
      %2790 = vst.msk [vmem:[%s253 + $0x1e8] sm:$0xff] %vm2728, %v2721
      %2791 = vst.msk [vmem:[%s253 + $0x1f0] sm:$0xff] %vm2728, %v2724
      %2792 = vst.msk [vmem:[%s253 + $0x1f8] sm:$0xff] %vm2728, %v2726
      %s2793 = smul.u32 64, %s17
      %p2794 = scmp.lt.s32.totalorder %s2793, 127
      %s2795 = scalar_select %p2794, %s2793, 127
      %s2796 = smul.addr %s2795, 8
      %s2797 = scalar_lea.vmem %s6, %s2796
      // Predicated region
      $region45: #{hash_nerf_forward.1} parent=43 // pred_check
        %p2798 = pneg %p166
      $region46: #{hash_nerf_forward.1} parent=43 // pred_check_branch
        %2800 = sbr.rel (%p2798) target = $region48
      $region47: #{hash_nerf_forward.1} parent=43 // pred_region
        %s2801 = smul.u32 64, %s17
      $region48: #{hash_nerf_forward.1} parent=43 // pred_fallthru
        _
    $region44: #{hash_nerf_forward.1} parent=5 // pred_fallthru
      _
    %p2802 = scmp.le.s32.totalorder 2, %s12
    // Predicated region
    $region49: #{hash_nerf_forward.1} parent=5 // pred_check
      %p2803 = pneg %p2802
    $region50: #{hash_nerf_forward.1} parent=5 // pred_check_branch
      %2805 = sbr.rel (%p2803) target = $region52
    $region51: #{hash_nerf_forward.1} parent=5 // pred_region
      %s2806 = ssub.s32 %s12, 2
      // Predicated region
      $region53: #{hash_nerf_forward.1} parent=51 // pred_check
        %p2807 = pneg %p172
      $region54: #{hash_nerf_forward.1} parent=51 // pred_check_branch
        %2809 = sbr.rel (%p2807) target = $region56
      $region55: #{hash_nerf_forward.1} parent=51 // pred_region
        %s2810 = smul.u32 64, %s18
        %p2811 = scmp.lt.s32.totalorder %s2810, 127
        %s2812 = scalar_select %p2811, %s2810, 127
        %s2813 = smul.addr %s2812, 8
        %s2814 = scalar_lea.vmem %s6, %s2813
      $region56: #{hash_nerf_forward.1} parent=51 // pred_fallthru
        _
    $region52: #{hash_nerf_forward.1} parent=5 // pred_fallthru
      _
  $region6: #{hash_nerf_forward.1} parent=0 // loop_footer
    %s16 = sadd.s32 1, %s12
  $region7: #{hash_nerf_forward.1} parent=0 // loop_footer_branch
    %11 = sbr.rel target = $region3
  $region8: #{hash_nerf_forward.1} parent=0 // loop_exit
    _

</llo_original>
